<compile_context>
chip_gen: v6e
topology: v6e:2x2x1
jax: 0.10.0
libtpu: 0.0.40
codegen_flags: <defaults>
</compile_context>

<pallas_src>
import jax
import jax.numpy as jnp
from jax.experimental import pallas as pl
from jax.experimental.pallas import tpu as pltpu

IN_FEATURES = 1200
HIDDEN = 512
TOTAL_CLASSES = 10


def _round_up(x, m):
    return pl.cdiv(x, m) * m


def _choose_tm(batch):
    if batch <= 128:
        # Small batch: single tile, rounded to bf16 sublane packing (16 rows).
        return int(_round_up(batch, 16))
    # Large batch: ensure >= 2 grid steps (v7x has 2 TensorCores), cap at 512 rows to
    # amortize the ~0.35 us per-step overhead on v6e/v5e while staying well inside VMEM.
    return int(min(512, _round_up(pl.cdiv(batch, 2), 16)))


def mlp_kernel(x_ref, w1_ref, w2_ref, b2_ref, o_ref):
    # fc1: (TM, 1200) f32 -> bf16 cast in-register, MXU matmul with f32 accumulation.
    x_bf16 = x_ref[...].astype(jnp.bfloat16)
    h = jnp.dot(x_bf16, w1_ref[...], preferred_element_type=jnp.float32)
    # fc2: (TM, 512) bf16 @ (512, C_PAD) bf16 -> f32, + folded bias. No activation
    # (matches the reference module).
    out = jnp.dot(h.astype(jnp.bfloat16), w2_ref[...],
                  preferred_element_type=jnp.float32)
    o_ref[...] = (out + b2_ref[...]).astype(o_ref.dtype)


def prepare_params(w1, b1, w2, b2):
    """One-time weight staging (call once, reuse across forward calls).

    w1: (1200, 512), b1: (1, 512) or (512,), w2: (512, C), b2: (1, C) or (C,), all f32.
    Returns (w1_bf16, w2_bf16_padded, b2_eff_f32_padded, num_classes).
    """
    num_classes = w2.shape[1]
    c_pad = int(_round_up(num_classes, 128))

    w1_p = w1.astype(jnp.bfloat16)                                        # (1200, 512)
    w2_p = jnp.pad(w2, ((0, 0), (0, c_pad - num_classes))).astype(jnp.bfloat16)

    # Fold fc1 bias through fc2 (f32): (x@W1 + b1)@W2 + b2 == x@W1@W2 + (b1@W2 + b2).
    b1_f = b1.reshape(1, -1).astype(jnp.float32)
    b2_f = b2.reshape(1, -1).astype(jnp.float32)
    b2_eff = b1_f @ w2.astype(jnp.float32) + b2_f                         # (1, C)
    b2_eff = jnp.pad(b2_eff, ((0, 0), (0, c_pad - num_classes))).astype(jnp.float32)

    return w1_p, w2_p, b2_eff, num_classes


def mlp_forward(x, prepped):
    """x: (B, 1200) f32; prepped: output of prepare_params."""
    w1_p, w2_p, b2_eff, num_classes = prepped
    B, K = x.shape
    H = w1_p.shape[1]
    C_pad = w2_p.shape[1]

    TM = _choose_tm(B)
    B_pad = int(_round_up(B, TM))
    if B_pad != B:
        x = jnp.pad(x, ((0, B_pad - B), (0, 0)))

    grid = (B_pad // TM,)

    cost = pl.CostEstimate(
        flops=2 * B_pad * (K * H + H * C_pad),
        transcendentals=0,
        bytes_accessed=(B_pad * K * 4            # x (f32, read once)
                        + w1_p.size * 2          # W1 bf16
                        + w2_p.size * 2          # W2 bf16
                        + b2_eff.size * 4        # folded bias f32
                        + B_pad * C_pad * 4),    # output f32
    )

    out_padded = pl.pallas_call(
        mlp_kernel,
        out_shape=jax.ShapeDtypeStruct((B_pad, C_pad), jnp.float32),
        grid_spec=pltpu.PrefetchScalarGridSpec(
            num_scalar_prefetch=0,
            grid=grid,
            in_specs=[
                # x tile: pipelined over the batch axis. Last dim (1200) equals the
                # full array dim, so no 128-multiple padding is required.
                pl.BlockSpec((TM, K), lambda i: (i, 0)),
                # Weights / bias: constant index_map -> VMEM-resident, never re-fetched.
                pl.BlockSpec((K, H), lambda i: (0, 0)),
                pl.BlockSpec((H, C_pad), lambda i: (0, 0)),
                pl.BlockSpec((1, C_pad), lambda i: (0, 0)),
            ],
            out_specs=pl.BlockSpec((TM, C_pad), lambda i: (i, 0)),
        ),
        compiler_params=pltpu.CompilerParams(
            dimension_semantics=("parallel",),
        ),
        cost_estimate=cost,
    )(x, w1_p, w2_p, b2_eff)

    # Strip batch padding and the lane-dense class padding.
    return out_padded[:B, :num_classes]


def init_params(key):
    # Deterministic init mimicking PyTorch Linear default: U(-1/sqrt(fan_in), +1/sqrt(fan_in)).
    k1, k2, k3, k4 = jax.random.split(key, 4)
    bound1 = 1.0 / (IN_FEATURES ** 0.5)
    bound2 = 1.0 / (HIDDEN ** 0.5)
    # Stored transposed relative to PyTorch: (in, out)
    w1 = jax.random.uniform(k1, (IN_FEATURES, HIDDEN), jnp.float32, -bound1, bound1)
    b1 = jax.random.uniform(k2, (1, HIDDEN), jnp.float32, -bound1, bound1)
    w2 = jax.random.uniform(k3, (HIDDEN, TOTAL_CLASSES), jnp.float32, -bound2, bound2)
    b2 = jax.random.uniform(k4, (1, TOTAL_CLASSES), jnp.float32, -bound2, bound2)
    return w1, b1, w2, b2


if __name__ == "__main__":
    key = jax.random.PRNGKey(0)
    kx, kp = jax.random.split(key)
    B = 8
    x = jax.random.normal(kx, (B, IN_FEATURES), jnp.float32)
    w1, b1, w2, b2 = init_params(kp)

    # One-time weight staging (hoisted out of the per-call path).
    prepped = jax.tree_util.tree_map(
        lambda a: a, prepare_params(w1, b1, w2, b2))

    out = mlp_forward(x, prepped)
    out = jax.block_until_ready(out)

    # Sanity check against plain-JAX f32 reference (loose tol: kernel uses bf16
    # weights/activations with f32 MXU accumulation and a folded bias).
    ref = (x @ w1 + b1) @ w2 + b2
    assert out.shape == (B, TOTAL_CLASSES)
    assert jnp.allclose(out, ref, atol=3e-2, rtol=3e-2), \
        float(jnp.max(jnp.abs(out - ref)))

    print("KERNEL_OK")
</pallas_src>

<mosaic_0001>
module attributes {stable_mosaic.version = 11 : i64} {
  func.func @mlp_kernel(%arg0: i32, %arg1: memref<16x1200xf32, #tpu.memory_space<vmem>>, %arg2: memref<1200x512xbf16, #tpu.memory_space<vmem>>, %arg3: memref<512x128xbf16, #tpu.memory_space<vmem>>, %arg4: memref<1x128xf32, #tpu.memory_space<vmem>>, %arg5: memref<16x128xf32, #tpu.memory_space<vmem>>) attributes {dimension_semantics = [#tpu.dimension_semantics<parallel>], iteration_bounds = array<i64: 1>, scalar_prefetch = 0 : i64, scratch_operands = 0 : i64, tpu.core_type = #tpu.core_type<tc>, window_params = [{transform_indices = @transform_0, window_bounds = array<i64: 16, 1200>}, {pipeline_mode = #tpu.pipeline_mode<synchronous>, transform_indices = @transform_1, window_bounds = array<i64: 1200, 512>}, {pipeline_mode = #tpu.pipeline_mode<synchronous>, transform_indices = @transform_2, window_bounds = array<i64: 512, 128>}, {pipeline_mode = #tpu.pipeline_mode<synchronous>, transform_indices = @transform_3, window_bounds = array<i64: 1, 128>}, {transform_indices = @transform_4, window_bounds = array<i64: 16, 128>}]} {
    %c0 = arith.constant 0 : index
    %c0_0 = arith.constant 0 : index
    %0 = vector.load %arg1[%c0, %c0_0] : memref<16x1200xf32, #tpu.memory_space<vmem>>, vector<16x1200xf32>
    %1 = arith.truncf %0 : vector<16x1200xf32> to vector<16x1200xbf16>
    %c0_1 = arith.constant 0 : index
    %c0_2 = arith.constant 0 : index
    %2 = vector.load %arg2[%c0_1, %c0_2] : memref<1200x512xbf16, #tpu.memory_space<vmem>>, vector<1200x512xbf16>
    %cst = arith.constant dense<0.000000e+00> : vector<16x512xf32>
    %3 = tpu.matmul %1, %2, %cst {dimension_numbers = #tpu.dot_dimension_numbers<[1], [0], [0], [1], [0, 0, 1, 1], [], []>} : vector<16x1200xbf16>, vector<1200x512xbf16>, vector<16x512xf32> -> vector<16x512xf32>
    %4 = arith.truncf %3 : vector<16x512xf32> to vector<16x512xbf16>
    %c0_3 = arith.constant 0 : index
    %c0_4 = arith.constant 0 : index
    %5 = vector.load %arg3[%c0_3, %c0_4] : memref<512x128xbf16, #tpu.memory_space<vmem>>, vector<512x128xbf16>
    %cst_5 = arith.constant dense<0.000000e+00> : vector<16x128xf32>
    %6 = tpu.matmul %4, %5, %cst_5 {dimension_numbers = #tpu.dot_dimension_numbers<[1], [0], [0], [1], [0, 0, 1, 1], [], []>} : vector<16x512xbf16>, vector<512x128xbf16>, vector<16x128xf32> -> vector<16x128xf32>
    %c0_6 = arith.constant 0 : index
    %c0_7 = arith.constant 0 : index
    %7 = vector.load %arg4[%c0_6, %c0_7] : memref<1x128xf32, #tpu.memory_space<vmem>>, vector<1x128xf32>
    %8 = vector.broadcast %7 : vector<1x128xf32> to vector<16x128xf32>
    %9 = arith.addf %6, %8 : vector<16x128xf32>
    %c0_8 = arith.constant 0 : index
    %c0_9 = arith.constant 0 : index
    %10 = vector.load %arg5[%c0_8, %c0_9] : memref<16x128xf32, #tpu.memory_space<vmem>>, vector<16x128xf32>
    tpu.vector_store %arg5[%c0_8, %c0_9], %9 {strides = array<i32>} : memref<16x128xf32, #tpu.memory_space<vmem>>, vector<16x128xf32>,
    return
  }
  func.func @transform_0(%arg0: i32) -> (i32, i32) {
    %c0_i32 = arith.constant 0 : i32
    %c0_i32_0 = arith.constant 0 : i32
    return %arg0, %c0_i32 : i32, i32
  }
  func.func @transform_1(%arg0: i32) -> (i32, i32) {
    %c0_i32 = arith.constant 0 : i32
    %c0_i32_0 = arith.constant 0 : i32
    %c0_i32_1 = arith.constant 0 : i32
    return %c0_i32, %c0_i32_0 : i32, i32
  }
  func.func @transform_2(%arg0: i32) -> (i32, i32) {
    %c0_i32 = arith.constant 0 : i32
    %c0_i32_0 = arith.constant 0 : i32
    %c0_i32_1 = arith.constant 0 : i32
    return %c0_i32, %c0_i32_0 : i32, i32
  }
  func.func @transform_3(%arg0: i32) -> (i32, i32) {
    %c0_i32 = arith.constant 0 : i32
    %c0_i32_0 = arith.constant 0 : i32
    %c0_i32_1 = arith.constant 0 : i32
    return %c0_i32, %c0_i32_0 : i32, i32
  }
  func.func @transform_4(%arg0: i32) -> (i32, i32) {
    %c0_i32 = arith.constant 0 : i32
    %c0_i32_0 = arith.constant 0 : i32
    return %arg0, %c0_i32 : i32, i32
  }
}

</mosaic_0001>

<llo_original>
// kernel: tpu_custom_call.1
$region0: #{tpu_custom_call.1}
  #allocation0 [shape = 'u32[]', space=smem, size = 0x4, offset = 0x4, fixed_abs, tag = 'smem constant byte address 0x4 - core index']
  #allocation1 [shape = 'u32[144,128]{1,0:T(1,128)}', space=vmem, size = 0x12000, scoped, tag = 'internal scratch']
  %s0 = inlined_call_operand.hbm [shape: f32[16,1200], index: 0, kind: input, shape index: {}]
  %s1 = inlined_call_operand.hbm [shape: bf16[1200,512], index: 1, kind: input, shape index: {}]
  %s2 = inlined_call_operand.hbm [shape: bf16[512,128], index: 2, kind: input, shape index: {}]
  %s3 = inlined_call_operand.hbm [shape: f32[1,128], index: 3, kind: input, shape index: {}]
  %s4 = inlined_call_operand.hbm [shape: f32[16,128], index: 4, kind: output, shape index: {}]
  %s5 = sld [smem:[#allocation0]]
  $region42: #{tpu_custom_call.1} parent=0
    _
  %s7 = ssub.s32 1, %s5
  %s8 = scalar_select 0, %s7, %s5
  $region1: #{tpu_custom_call.1} parent=0
    #allocation2 [shape = 'u8[81920]{0}', space=vmem, size = 0x14000, scoped, tag = 'input window, operand 0, single buffered']
    #allocation3 [shape = 's32[1]{0}', space=sflag, size = 0x4, scoped, tag = 'scoped memory for tpu_custom_call.1']
    #allocation4 [shape = 's32[1]{0}', space=sflag, size = 0x4, scoped, tag = 'scoped memory for tpu_custom_call.1']
    #allocation5 [shape = 'u8[1228800]{0}', space=vmem, size = 0x12c000, scoped, tag = 'input window, operand 1, single buffered']
    #allocation6 [shape = 's32[1]{0}', space=sflag, size = 0x4, scoped, tag = 'scoped memory for tpu_custom_call.1']
    #allocation7 [shape = 'u8[131072]{0}', space=vmem, size = 0x20000, scoped, tag = 'input window, operand 2, single buffered']
    #allocation8 [shape = 'u8[512]{0}', space=vmem, size = 0x400, scoped, tag = 'input window, operand 3, single buffered']
    #allocation9 [shape = 's32[1]{0}', space=sflag, size = 0x4, scoped, tag = 'scoped memory for tpu_custom_call.1']
    #allocation10 [shape = 'u8[8192]{0}', space=vmem, size = 0x2000, scoped, tag = 'output window, operand 0, single buffered']
    %9 = vsyncpa [#allocation3], 0
    %10 = vsyncpa [#allocation6], 0
    %11 = vsyncpa [#allocation9], 0
    %12 = vsyncpa [#allocation4], 0
    // Predicated region
    $region2: #{tpu_custom_call.1} parent=1 // pred_check
      _
    $region3: #{tpu_custom_call.1} parent=1 // pred_check_branch
      %14 = sbr.rel (0) target = $region5
    $region4: #{tpu_custom_call.1} parent=1 // pred_region
      %s16 = ssub.s32 2560, 2560
      %17 = vsyncadd [#allocation3], %s16
      %s18 = sshll.u32 [#allocation2], 4
      %s19 = int_to_ptr.vmem [resolvable:$true] %s18
      %24 = dma.hbm_to_vmem [thread:$0]  %s0, 2560, %s19, [#allocation3], 1280, 1280, 80
    $region5: #{tpu_custom_call.1} parent=1 // pred_fallthru
      _
    // Predicated region
    $region6: #{tpu_custom_call.1} parent=1 // pred_check
      _
    $region7: #{tpu_custom_call.1} parent=1 // pred_check_branch
      %26 = sbr.rel (0) target = $region9
    $region8: #{tpu_custom_call.1} parent=1 // pred_region
      %s28 = ssub.s32 38400, 38400
      %29 = vsyncadd [#allocation6], %s28
      %s30 = sshll.u32 [#allocation5], 4
      %s31 = int_to_ptr.vmem [resolvable:$true] %s30
      %36 = dma.hbm_to_vmem [thread:$0]  %s1, 38400, %s31, [#allocation6], 256, 256, 16
    $region9: #{tpu_custom_call.1} parent=1 // pred_fallthru
      _
    // Predicated region
    $region10: #{tpu_custom_call.1} parent=1 // pred_check
      _
    $region11: #{tpu_custom_call.1} parent=1 // pred_check_branch
      %38 = sbr.rel (0) target = $region13
    $region12: #{tpu_custom_call.1} parent=1 // pred_region
      %s40 = ssub.s32 4096, 4096
      %41 = vsyncadd [#allocation6], %s40
      %s42 = sshll.u32 [#allocation7], 4
      %s43 = int_to_ptr.vmem [resolvable:$true] %s42
      %48 = dma.hbm_to_vmem [thread:$0]  %s2, 4096, %s43, [#allocation6], 64, 64, 4
    $region13: #{tpu_custom_call.1} parent=1 // pred_fallthru
      _
    // Predicated region
    $region14: #{tpu_custom_call.1} parent=1 // pred_check
      _
    $region15: #{tpu_custom_call.1} parent=1 // pred_check_branch
      %50 = sbr.rel (0) target = $region17
    $region16: #{tpu_custom_call.1} parent=1 // pred_region
      %s52 = ssub.s32 16, 16
      %53 = vsyncadd [#allocation9], %s52
      %s55 = sshll.u32 [#allocation8], 4
      %s56 = int_to_ptr.vmem [resolvable:$true] %s55
      %58 = dma.hbm_to_vmem [thread:$0]  %s3, 16, %s56, [#allocation9]
    $region17: #{tpu_custom_call.1} parent=1 // pred_fallthru
      _
    // Predicated region
    $region18: #{tpu_custom_call.1} parent=1 // pred_check
      _
    $region19: #{tpu_custom_call.1} parent=1 // pred_check_branch
      %60 = sbr.rel (0) target = $region21
    $region20: #{tpu_custom_call.1} parent=1 // pred_region
      %61 = dma.done [#allocation3], 2560
    $region21: #{tpu_custom_call.1} parent=1 // pred_fallthru
      _
    // Predicated region
    $region22: #{tpu_custom_call.1} parent=1 // pred_check
      _
    $region23: #{tpu_custom_call.1} parent=1 // pred_check_branch
      %63 = sbr.rel (0) target = $region25
    $region24: #{tpu_custom_call.1} parent=1 // pred_region
      %64 = dma.done [#allocation6], 38400
    $region25: #{tpu_custom_call.1} parent=1 // pred_fallthru
      _
    // Predicated region
    $region26: #{tpu_custom_call.1} parent=1 // pred_check
      _
    $region27: #{tpu_custom_call.1} parent=1 // pred_check_branch
      %66 = sbr.rel (0) target = $region29
    $region28: #{tpu_custom_call.1} parent=1 // pred_region
      %67 = dma.done [#allocation6], 4096
    $region29: #{tpu_custom_call.1} parent=1 // pred_fallthru
      _
    // Predicated region
    $region30: #{tpu_custom_call.1} parent=1 // pred_check
      _
    $region31: #{tpu_custom_call.1} parent=1 // pred_check_branch
      %69 = sbr.rel (0) target = $region33
    $region32: #{tpu_custom_call.1} parent=1 // pred_region
      %70 = dma.done [#allocation9], 16
    $region33: #{tpu_custom_call.1} parent=1 // pred_fallthru
      _
    %v72 = vld [vmem:[#allocation2] sm:$0xff]
    %v73 = vld [vmem:[#allocation2 + $0x8] sm:$0xff]
    %v74 = vld [vmem:[#allocation2 + $0x10] sm:$0xff]
    %v75 = vld [vmem:[#allocation2 + $0x18] sm:$0xff]
    %v76 = vld [vmem:[#allocation2 + $0x20] sm:$0xff]
    %v77 = vld [vmem:[#allocation2 + $0x28] sm:$0xff]
    %v78 = vld [vmem:[#allocation2 + $0x30] sm:$0xff]
    %v79 = vld [vmem:[#allocation2 + $0x38] sm:$0xff]
    %v80 = vld [vmem:[#allocation2 + $0x40] sm:$0xff]
    %v81 = vld [vmem:[#allocation2 + $0x48] sm:$0xff]
    %v82 = vld [vmem:[#allocation2 + $0x50] sm:$0xff]
    %v83 = vld [vmem:[#allocation2 + $0x58] sm:$0xff]
    %v84 = vld [vmem:[#allocation2 + $0x60] sm:$0xff]
    %v85 = vld [vmem:[#allocation2 + $0x68] sm:$0xff]
    %v86 = vld [vmem:[#allocation2 + $0x70] sm:$0xff]
    %v87 = vld [vmem:[#allocation2 + $0x78] sm:$0xff]
    %v88 = vld [vmem:[#allocation2 + $0x80] sm:$0xff]
    %v89 = vld [vmem:[#allocation2 + $0x88] sm:$0xff]
    %v90 = vld [vmem:[#allocation2 + $0x90] sm:$0xff]
    %v91 = vld [vmem:[#allocation2 + $0x98] sm:$0xff]
    %v92 = vpack.c.bf16 %v82, %v72
    %v93 = vpack.c.bf16 %v83, %v73
    %v94 = vpack.c.bf16 %v84, %v74
    %v95 = vpack.c.bf16 %v85, %v75
    %v96 = vpack.c.bf16 %v86, %v76
    %v97 = vpack.c.bf16 %v87, %v77
    %v98 = vpack.c.bf16 %v88, %v78
    %v99 = vpack.c.bf16 %v89, %v79
    %v100 = vpack.c.bf16 %v90, %v80
    %v101 = vpack.c.bf16 %v91, %v81
    %v102 = vld [vmem:[#allocation5] sm:$0xff]
    %v103 = vld [vmem:[#allocation5 + $0x8] sm:$0xff]
    %v104 = vld [vmem:[#allocation5 + $0x10] sm:$0xff]
    %v105 = vld [vmem:[#allocation5 + $0x18] sm:$0xff]
    %v106 = vld [vmem:[#allocation5 + $0x20] sm:$0xff]
    %v107 = vld [vmem:[#allocation5 + $0x28] sm:$0xff]
    %v108 = vld [vmem:[#allocation5 + $0x30] sm:$0xff]
    %v109 = vld [vmem:[#allocation5 + $0x38] sm:$0xff]
    %v110 = vld [vmem:[#allocation5 + $0x40] sm:$0xff]
    %v111 = vld [vmem:[#allocation5 + $0x48] sm:$0xff]
    %v112 = vld [vmem:[#allocation5 + $0x50] sm:$0xff]
    %v113 = vld [vmem:[#allocation5 + $0x58] sm:$0xff]
    %v114 = vld [vmem:[#allocation5 + $0x60] sm:$0xff]
    %v115 = vld [vmem:[#allocation5 + $0x68] sm:$0xff]
    %v116 = vld [vmem:[#allocation5 + $0x70] sm:$0xff]
    %v117 = vld [vmem:[#allocation5 + $0x78] sm:$0xff]
    %v118 = vld [vmem:[#allocation5 + $0x80] sm:$0xff]
    %v119 = vld [vmem:[#allocation5 + $0x88] sm:$0xff]
    %v120 = vld [vmem:[#allocation5 + $0x90] sm:$0xff]
    %v121 = vld [vmem:[#allocation5 + $0x98] sm:$0xff]
    %v122 = vld [vmem:[#allocation5 + $0xa0] sm:$0xff]
    %v123 = vld [vmem:[#allocation5 + $0xa8] sm:$0xff]
    %v124 = vld [vmem:[#allocation5 + $0xb0] sm:$0xff]
    %v125 = vld [vmem:[#allocation5 + $0xb8] sm:$0xff]
    %v126 = vld [vmem:[#allocation5 + $0xc0] sm:$0xff]
    %v127 = vld [vmem:[#allocation5 + $0xc8] sm:$0xff]
    %v128 = vld [vmem:[#allocation5 + $0xd0] sm:$0xff]
    %v129 = vld [vmem:[#allocation5 + $0xd8] sm:$0xff]
    %v130 = vld [vmem:[#allocation5 + $0xe0] sm:$0xff]
    %v131 = vld [vmem:[#allocation5 + $0xe8] sm:$0xff]
    %v132 = vld [vmem:[#allocation5 + $0xf0] sm:$0xff]
    %v133 = vld [vmem:[#allocation5 + $0xf8] sm:$0xff]
    %v134 = vld [vmem:[#allocation5 + $0x100] sm:$0xff]
    %v135 = vld [vmem:[#allocation5 + $0x108] sm:$0xff]
    %v136 = vld [vmem:[#allocation5 + $0x110] sm:$0xff]
    %v137 = vld [vmem:[#allocation5 + $0x118] sm:$0xff]
    %v138 = vld [vmem:[#allocation5 + $0x120] sm:$0xff]
    %v139 = vld [vmem:[#allocation5 + $0x128] sm:$0xff]
    %v140 = vld [vmem:[#allocation5 + $0x130] sm:$0xff]
    %v141 = vld [vmem:[#allocation5 + $0x138] sm:$0xff]
    %v142 = vld [vmem:[#allocation5 + $0x140] sm:$0xff]
    %v143 = vld [vmem:[#allocation5 + $0x148] sm:$0xff]
    %v144 = vld [vmem:[#allocation5 + $0x150] sm:$0xff]
    %v145 = vld [vmem:[#allocation5 + $0x158] sm:$0xff]
    %v146 = vld [vmem:[#allocation5 + $0x160] sm:$0xff]
    %v147 = vld [vmem:[#allocation5 + $0x168] sm:$0xff]
    %v148 = vld [vmem:[#allocation5 + $0x170] sm:$0xff]
    %v149 = vld [vmem:[#allocation5 + $0x178] sm:$0xff]
    %v150 = vld [vmem:[#allocation5 + $0x180] sm:$0xff]
    %v151 = vld [vmem:[#allocation5 + $0x188] sm:$0xff]
    %v152 = vld [vmem:[#allocation5 + $0x190] sm:$0xff]
    %v153 = vld [vmem:[#allocation5 + $0x198] sm:$0xff]
    %v154 = vld [vmem:[#allocation5 + $0x1a0] sm:$0xff]
    %v155 = vld [vmem:[#allocation5 + $0x1a8] sm:$0xff]
    %v156 = vld [vmem:[#allocation5 + $0x1b0] sm:$0xff]
    %v157 = vld [vmem:[#allocation5 + $0x1b8] sm:$0xff]
    %v158 = vld [vmem:[#allocation5 + $0x1c0] sm:$0xff]
    %v159 = vld [vmem:[#allocation5 + $0x1c8] sm:$0xff]
    %v160 = vld [vmem:[#allocation5 + $0x1d0] sm:$0xff]
    %v161 = vld [vmem:[#allocation5 + $0x1d8] sm:$0xff]
    %v162 = vld [vmem:[#allocation5 + $0x1e0] sm:$0xff]
    %v163 = vld [vmem:[#allocation5 + $0x1e8] sm:$0xff]
    %v164 = vld [vmem:[#allocation5 + $0x1f0] sm:$0xff]
    %v165 = vld [vmem:[#allocation5 + $0x1f8] sm:$0xff]
    %v166 = vld [vmem:[#allocation5 + $0x200] sm:$0xff]
    %v167 = vld [vmem:[#allocation5 + $0x208] sm:$0xff]
    %v168 = vld [vmem:[#allocation5 + $0x210] sm:$0xff]
    %v169 = vld [vmem:[#allocation5 + $0x218] sm:$0xff]
    %v170 = vld [vmem:[#allocation5 + $0x220] sm:$0xff]
    %v171 = vld [vmem:[#allocation5 + $0x228] sm:$0xff]
    %v172 = vld [vmem:[#allocation5 + $0x230] sm:$0xff]
    %v173 = vld [vmem:[#allocation5 + $0x238] sm:$0xff]
    %v174 = vld [vmem:[#allocation5 + $0x240] sm:$0xff]
    %v175 = vld [vmem:[#allocation5 + $0x248] sm:$0xff]
    %v176 = vld [vmem:[#allocation5 + $0x250] sm:$0xff]
    %v177 = vld [vmem:[#allocation5 + $0x258] sm:$0xff]
    %v178 = vld [vmem:[#allocation5 + $0x260] sm:$0xff]
    %v179 = vld [vmem:[#allocation5 + $0x268] sm:$0xff]
    %v180 = vld [vmem:[#allocation5 + $0x270] sm:$0xff]
    %v181 = vld [vmem:[#allocation5 + $0x278] sm:$0xff]
    %v182 = vld [vmem:[#allocation5 + $0x280] sm:$0xff]
    %v183 = vld [vmem:[#allocation5 + $0x288] sm:$0xff]
    %v184 = vld [vmem:[#allocation5 + $0x290] sm:$0xff]
    %v185 = vld [vmem:[#allocation5 + $0x298] sm:$0xff]
    %v186 = vld [vmem:[#allocation5 + $0x2a0] sm:$0xff]
    %v187 = vld [vmem:[#allocation5 + $0x2a8] sm:$0xff]
    %v188 = vld [vmem:[#allocation5 + $0x2b0] sm:$0xff]
    %v189 = vld [vmem:[#allocation5 + $0x2b8] sm:$0xff]
    %v190 = vld [vmem:[#allocation5 + $0x2c0] sm:$0xff]
    %v191 = vld [vmem:[#allocation5 + $0x2c8] sm:$0xff]
    %v192 = vld [vmem:[#allocation5 + $0x2d0] sm:$0xff]
    %v193 = vld [vmem:[#allocation5 + $0x2d8] sm:$0xff]
    %v194 = vld [vmem:[#allocation5 + $0x2e0] sm:$0xff]
    %v195 = vld [vmem:[#allocation5 + $0x2e8] sm:$0xff]
    %v196 = vld [vmem:[#allocation5 + $0x2f0] sm:$0xff]
    %v197 = vld [vmem:[#allocation5 + $0x2f8] sm:$0xff]
    %v198 = vld [vmem:[#allocation5 + $0x300] sm:$0xff]
    %v199 = vld [vmem:[#allocation5 + $0x308] sm:$0xff]
    %v200 = vld [vmem:[#allocation5 + $0x310] sm:$0xff]
    %v201 = vld [vmem:[#allocation5 + $0x318] sm:$0xff]
    %v202 = vld [vmem:[#allocation5 + $0x320] sm:$0xff]
    %v203 = vld [vmem:[#allocation5 + $0x328] sm:$0xff]
    %v204 = vld [vmem:[#allocation5 + $0x330] sm:$0xff]
    %v205 = vld [vmem:[#allocation5 + $0x338] sm:$0xff]
    %v206 = vld [vmem:[#allocation5 + $0x340] sm:$0xff]
    %v207 = vld [vmem:[#allocation5 + $0x348] sm:$0xff]
    %v208 = vld [vmem:[#allocation5 + $0x350] sm:$0xff]
    %v209 = vld [vmem:[#allocation5 + $0x358] sm:$0xff]
    %v210 = vld [vmem:[#allocation5 + $0x360] sm:$0xff]
    %v211 = vld [vmem:[#allocation5 + $0x368] sm:$0xff]
    %v212 = vld [vmem:[#allocation5 + $0x370] sm:$0xff]
    %v213 = vld [vmem:[#allocation5 + $0x378] sm:$0xff]
    %v214 = vld [vmem:[#allocation5 + $0x380] sm:$0xff]
    %v215 = vld [vmem:[#allocation5 + $0x388] sm:$0xff]
    %v216 = vld [vmem:[#allocation5 + $0x390] sm:$0xff]
    %v217 = vld [vmem:[#allocation5 + $0x398] sm:$0xff]
    %v218 = vld [vmem:[#allocation5 + $0x3a0] sm:$0xff]
    %v219 = vld [vmem:[#allocation5 + $0x3a8] sm:$0xff]
    %v220 = vld [vmem:[#allocation5 + $0x3b0] sm:$0xff]
    %v221 = vld [vmem:[#allocation5 + $0x3b8] sm:$0xff]
    %v222 = vld [vmem:[#allocation5 + $0x3c0] sm:$0xff]
    %v223 = vld [vmem:[#allocation5 + $0x3c8] sm:$0xff]
    %v224 = vld [vmem:[#allocation5 + $0x3d0] sm:$0xff]
    %v225 = vld [vmem:[#allocation5 + $0x3d8] sm:$0xff]
    %v226 = vld [vmem:[#allocation5 + $0x3e0] sm:$0xff]
    %v227 = vld [vmem:[#allocation5 + $0x3e8] sm:$0xff]
    %v228 = vld [vmem:[#allocation5 + $0x3f0] sm:$0xff]
    %v229 = vld [vmem:[#allocation5 + $0x3f8] sm:$0xff]
    %v230 = vld [vmem:[#allocation5 + $0x400] sm:$0xff]
    %v231 = vld [vmem:[#allocation5 + $0x408] sm:$0xff]
    %v232 = vld [vmem:[#allocation5 + $0x410] sm:$0xff]
    %v233 = vld [vmem:[#allocation5 + $0x418] sm:$0xff]
    %v234 = vld [vmem:[#allocation5 + $0x420] sm:$0xff]
    %v235 = vld [vmem:[#allocation5 + $0x428] sm:$0xff]
    %v236 = vld [vmem:[#allocation5 + $0x430] sm:$0xff]
    %v237 = vld [vmem:[#allocation5 + $0x438] sm:$0xff]
    %v238 = vld [vmem:[#allocation5 + $0x440] sm:$0xff]
    %v239 = vld [vmem:[#allocation5 + $0x448] sm:$0xff]
    %v240 = vld [vmem:[#allocation5 + $0x450] sm:$0xff]
    %v241 = vld [vmem:[#allocation5 + $0x458] sm:$0xff]
    %v242 = vld [vmem:[#allocation5 + $0x460] sm:$0xff]
    %v243 = vld [vmem:[#allocation5 + $0x468] sm:$0xff]
    %v244 = vld [vmem:[#allocation5 + $0x470] sm:$0xff]
    %v245 = vld [vmem:[#allocation5 + $0x478] sm:$0xff]
    %v246 = vld [vmem:[#allocation5 + $0x480] sm:$0xff]
    %v247 = vld [vmem:[#allocation5 + $0x488] sm:$0xff]
    %v248 = vld [vmem:[#allocation5 + $0x490] sm:$0xff]
    %v249 = vld [vmem:[#allocation5 + $0x498] sm:$0xff]
    %v250 = vld [vmem:[#allocation5 + $0x4a0] sm:$0xff]
    %v251 = vld [vmem:[#allocation5 + $0x4a8] sm:$0xff]
    %v252 = vld [vmem:[#allocation5 + $0x4b0] sm:$0xff]
    %v253 = vld [vmem:[#allocation5 + $0x4b8] sm:$0xff]
    %v254 = vld [vmem:[#allocation5 + $0x4c0] sm:$0xff]
    %v255 = vld [vmem:[#allocation5 + $0x4c8] sm:$0xff]
    %v256 = vld [vmem:[#allocation5 + $0x4d0] sm:$0xff]
    %v257 = vld [vmem:[#allocation5 + $0x4d8] sm:$0xff]
    %v258 = vld [vmem:[#allocation5 + $0x4e0] sm:$0xff]
    %v259 = vld [vmem:[#allocation5 + $0x4e8] sm:$0xff]
    %v260 = vld [vmem:[#allocation5 + $0x4f0] sm:$0xff]
    %v261 = vld [vmem:[#allocation5 + $0x4f8] sm:$0xff]
    %v262 = vld [vmem:[#allocation5 + $0x500] sm:$0xff]
    %v263 = vld [vmem:[#allocation5 + $0x508] sm:$0xff]
    %v264 = vld [vmem:[#allocation5 + $0x510] sm:$0xff]
    %v265 = vld [vmem:[#allocation5 + $0x518] sm:$0xff]
    %v266 = vld [vmem:[#allocation5 + $0x520] sm:$0xff]
    %v267 = vld [vmem:[#allocation5 + $0x528] sm:$0xff]
    %v268 = vld [vmem:[#allocation5 + $0x530] sm:$0xff]
    %v269 = vld [vmem:[#allocation5 + $0x538] sm:$0xff]
    %v270 = vld [vmem:[#allocation5 + $0x540] sm:$0xff]
    %v271 = vld [vmem:[#allocation5 + $0x548] sm:$0xff]
    %v272 = vld [vmem:[#allocation5 + $0x550] sm:$0xff]
    %v273 = vld [vmem:[#allocation5 + $0x558] sm:$0xff]
    %v274 = vld [vmem:[#allocation5 + $0x560] sm:$0xff]
    %v275 = vld [vmem:[#allocation5 + $0x568] sm:$0xff]
    %v276 = vld [vmem:[#allocation5 + $0x570] sm:$0xff]
    %v277 = vld [vmem:[#allocation5 + $0x578] sm:$0xff]
    %v278 = vld [vmem:[#allocation5 + $0x580] sm:$0xff]
    %v279 = vld [vmem:[#allocation5 + $0x588] sm:$0xff]
    %v280 = vld [vmem:[#allocation5 + $0x590] sm:$0xff]
    %v281 = vld [vmem:[#allocation5 + $0x598] sm:$0xff]
    %v282 = vld [vmem:[#allocation5 + $0x5a0] sm:$0xff]
    %v283 = vld [vmem:[#allocation5 + $0x5a8] sm:$0xff]
    %v284 = vld [vmem:[#allocation5 + $0x5b0] sm:$0xff]
    %v285 = vld [vmem:[#allocation5 + $0x5b8] sm:$0xff]
    %v286 = vld [vmem:[#allocation5 + $0x5c0] sm:$0xff]
    %v287 = vld [vmem:[#allocation5 + $0x5c8] sm:$0xff]
    %v288 = vld [vmem:[#allocation5 + $0x5d0] sm:$0xff]
    %v289 = vld [vmem:[#allocation5 + $0x5d8] sm:$0xff]
    %v290 = vld [vmem:[#allocation5 + $0x5e0] sm:$0xff]
    %v291 = vld [vmem:[#allocation5 + $0x5e8] sm:$0xff]
    %v292 = vld [vmem:[#allocation5 + $0x5f0] sm:$0xff]
    %v293 = vld [vmem:[#allocation5 + $0x5f8] sm:$0xff]
    %v294 = vld [vmem:[#allocation5 + $0x600] sm:$0xff]
    %v295 = vld [vmem:[#allocation5 + $0x608] sm:$0xff]
    %v296 = vld [vmem:[#allocation5 + $0x610] sm:$0xff]
    %v297 = vld [vmem:[#allocation5 + $0x618] sm:$0xff]
    %v298 = vld [vmem:[#allocation5 + $0x620] sm:$0xff]
    %v299 = vld [vmem:[#allocation5 + $0x628] sm:$0xff]
    %v300 = vld [vmem:[#allocation5 + $0x630] sm:$0xff]
    %v301 = vld [vmem:[#allocation5 + $0x638] sm:$0xff]
    %v302 = vld [vmem:[#allocation5 + $0x640] sm:$0xff]
    %v303 = vld [vmem:[#allocation5 + $0x648] sm:$0xff]
    %v304 = vld [vmem:[#allocation5 + $0x650] sm:$0xff]
    %v305 = vld [vmem:[#allocation5 + $0x658] sm:$0xff]
    %v306 = vld [vmem:[#allocation5 + $0x660] sm:$0xff]
    %v307 = vld [vmem:[#allocation5 + $0x668] sm:$0xff]
    %v308 = vld [vmem:[#allocation5 + $0x670] sm:$0xff]
    %v309 = vld [vmem:[#allocation5 + $0x678] sm:$0xff]
    %v310 = vld [vmem:[#allocation5 + $0x680] sm:$0xff]
    %v311 = vld [vmem:[#allocation5 + $0x688] sm:$0xff]
    %v312 = vld [vmem:[#allocation5 + $0x690] sm:$0xff]
    %v313 = vld [vmem:[#allocation5 + $0x698] sm:$0xff]
    %v314 = vld [vmem:[#allocation5 + $0x6a0] sm:$0xff]
    %v315 = vld [vmem:[#allocation5 + $0x6a8] sm:$0xff]
    %v316 = vld [vmem:[#allocation5 + $0x6b0] sm:$0xff]
    %v317 = vld [vmem:[#allocation5 + $0x6b8] sm:$0xff]
    %v318 = vld [vmem:[#allocation5 + $0x6c0] sm:$0xff]
    %v319 = vld [vmem:[#allocation5 + $0x6c8] sm:$0xff]
    %v320 = vld [vmem:[#allocation5 + $0x6d0] sm:$0xff]
    %v321 = vld [vmem:[#allocation5 + $0x6d8] sm:$0xff]
    %v322 = vld [vmem:[#allocation5 + $0x6e0] sm:$0xff]
    %v323 = vld [vmem:[#allocation5 + $0x6e8] sm:$0xff]
    %v324 = vld [vmem:[#allocation5 + $0x6f0] sm:$0xff]
    %v325 = vld [vmem:[#allocation5 + $0x6f8] sm:$0xff]
    %v326 = vld [vmem:[#allocation5 + $0x700] sm:$0xff]
    %v327 = vld [vmem:[#allocation5 + $0x708] sm:$0xff]
    %v328 = vld [vmem:[#allocation5 + $0x710] sm:$0xff]
    %v329 = vld [vmem:[#allocation5 + $0x718] sm:$0xff]
    %v330 = vld [vmem:[#allocation5 + $0x720] sm:$0xff]
    %v331 = vld [vmem:[#allocation5 + $0x728] sm:$0xff]
    %v332 = vld [vmem:[#allocation5 + $0x730] sm:$0xff]
    %v333 = vld [vmem:[#allocation5 + $0x738] sm:$0xff]
    %v334 = vld [vmem:[#allocation5 + $0x740] sm:$0xff]
    %v335 = vld [vmem:[#allocation5 + $0x748] sm:$0xff]
    %v336 = vld [vmem:[#allocation5 + $0x750] sm:$0xff]
    %v337 = vld [vmem:[#allocation5 + $0x758] sm:$0xff]
    %v338 = vld [vmem:[#allocation5 + $0x760] sm:$0xff]
    %v339 = vld [vmem:[#allocation5 + $0x768] sm:$0xff]
    %v340 = vld [vmem:[#allocation5 + $0x770] sm:$0xff]
    %v341 = vld [vmem:[#allocation5 + $0x778] sm:$0xff]
    %v342 = vld [vmem:[#allocation5 + $0x780] sm:$0xff]
    %v343 = vld [vmem:[#allocation5 + $0x788] sm:$0xff]
    %v344 = vld [vmem:[#allocation5 + $0x790] sm:$0xff]
    %v345 = vld [vmem:[#allocation5 + $0x798] sm:$0xff]
    %v346 = vld [vmem:[#allocation5 + $0x7a0] sm:$0xff]
    %v347 = vld [vmem:[#allocation5 + $0x7a8] sm:$0xff]
    %v348 = vld [vmem:[#allocation5 + $0x7b0] sm:$0xff]
    %v349 = vld [vmem:[#allocation5 + $0x7b8] sm:$0xff]
    %v350 = vld [vmem:[#allocation5 + $0x7c0] sm:$0xff]
    %v351 = vld [vmem:[#allocation5 + $0x7c8] sm:$0xff]
    %v352 = vld [vmem:[#allocation5 + $0x7d0] sm:$0xff]
    %v353 = vld [vmem:[#allocation5 + $0x7d8] sm:$0xff]
    %v354 = vld [vmem:[#allocation5 + $0x7e0] sm:$0xff]
    %v355 = vld [vmem:[#allocation5 + $0x7e8] sm:$0xff]
    %v356 = vld [vmem:[#allocation5 + $0x7f0] sm:$0xff]
    %v357 = vld [vmem:[#allocation5 + $0x7f8] sm:$0xff]
    %v358 = vld [vmem:[#allocation5 + $0x800] sm:$0xff]
    %v359 = vld [vmem:[#allocation5 + $0x808] sm:$0xff]
    %v360 = vld [vmem:[#allocation5 + $0x810] sm:$0xff]
    %v361 = vld [vmem:[#allocation5 + $0x818] sm:$0xff]
    %v362 = vld [vmem:[#allocation5 + $0x820] sm:$0xff]
    %v363 = vld [vmem:[#allocation5 + $0x828] sm:$0xff]
    %v364 = vld [vmem:[#allocation5 + $0x830] sm:$0xff]
    %v365 = vld [vmem:[#allocation5 + $0x838] sm:$0xff]
    %v366 = vld [vmem:[#allocation5 + $0x840] sm:$0xff]
    %v367 = vld [vmem:[#allocation5 + $0x848] sm:$0xff]
    %v368 = vld [vmem:[#allocation5 + $0x850] sm:$0xff]
    %v369 = vld [vmem:[#allocation5 + $0x858] sm:$0xff]
    %v370 = vld [vmem:[#allocation5 + $0x860] sm:$0xff]
    %v371 = vld [vmem:[#allocation5 + $0x868] sm:$0xff]
    %v372 = vld [vmem:[#allocation5 + $0x870] sm:$0xff]
    %v373 = vld [vmem:[#allocation5 + $0x878] sm:$0xff]
    %v374 = vld [vmem:[#allocation5 + $0x880] sm:$0xff]
    %v375 = vld [vmem:[#allocation5 + $0x888] sm:$0xff]
    %v376 = vld [vmem:[#allocation5 + $0x890] sm:$0xff]
    %v377 = vld [vmem:[#allocation5 + $0x898] sm:$0xff]
    %v378 = vld [vmem:[#allocation5 + $0x8a0] sm:$0xff]
    %v379 = vld [vmem:[#allocation5 + $0x8a8] sm:$0xff]
    %v380 = vld [vmem:[#allocation5 + $0x8b0] sm:$0xff]
    %v381 = vld [vmem:[#allocation5 + $0x8b8] sm:$0xff]
    %v382 = vld [vmem:[#allocation5 + $0x8c0] sm:$0xff]
    %v383 = vld [vmem:[#allocation5 + $0x8c8] sm:$0xff]
    %v384 = vld [vmem:[#allocation5 + $0x8d0] sm:$0xff]
    %v385 = vld [vmem:[#allocation5 + $0x8d8] sm:$0xff]
    %v386 = vld [vmem:[#allocation5 + $0x8e0] sm:$0xff]
    %v387 = vld [vmem:[#allocation5 + $0x8e8] sm:$0xff]
    %v388 = vld [vmem:[#allocation5 + $0x8f0] sm:$0xff]
    %v389 = vld [vmem:[#allocation5 + $0x8f8] sm:$0xff]
    %v390 = vld [vmem:[#allocation5 + $0x900] sm:$0xff]
    %v391 = vld [vmem:[#allocation5 + $0x908] sm:$0xff]
    %v392 = vld [vmem:[#allocation5 + $0x910] sm:$0xff]
    %v393 = vld [vmem:[#allocation5 + $0x918] sm:$0xff]
    %v394 = vld [vmem:[#allocation5 + $0x920] sm:$0xff]
    %v395 = vld [vmem:[#allocation5 + $0x928] sm:$0xff]
    %v396 = vld [vmem:[#allocation5 + $0x930] sm:$0xff]
    %v397 = vld [vmem:[#allocation5 + $0x938] sm:$0xff]
    %v398 = vld [vmem:[#allocation5 + $0x940] sm:$0xff]
    %v399 = vld [vmem:[#allocation5 + $0x948] sm:$0xff]
    %v400 = vld [vmem:[#allocation5 + $0x950] sm:$0xff]
    %v401 = vld [vmem:[#allocation5 + $0x958] sm:$0xff]
    %v702 = vunpack.c.l.b16 %v102
    %v703 = vunpack.c.h.b16 %v102
    %v704 = vunpack.c.l.b16 %v103
    %v705 = vunpack.c.h.b16 %v103
    %v706 = vunpack.c.l.b16 %v104
    %v707 = vunpack.c.h.b16 %v104
    %v708 = vunpack.c.l.b16 %v105
    %v709 = vunpack.c.h.b16 %v105
    %v710 = vunpack.c.l.b16 %v106
    %v711 = vunpack.c.h.b16 %v106
    %v712 = vunpack.c.l.b16 %v107
    %v713 = vunpack.c.h.b16 %v107
    %v714 = vunpack.c.l.b16 %v108
    %v715 = vunpack.c.h.b16 %v108
    %v716 = vunpack.c.l.b16 %v109
    %v717 = vunpack.c.h.b16 %v109
    %v718 = vunpack.c.l.b16 %v110
    %v719 = vunpack.c.h.b16 %v110
    %v720 = vunpack.c.l.b16 %v111
    %v721 = vunpack.c.h.b16 %v111
    %v722 = vunpack.c.l.b16 %v112
    %v723 = vunpack.c.h.b16 %v112
    %v724 = vunpack.c.l.b16 %v113
    %v725 = vunpack.c.h.b16 %v113
    %v726 = vunpack.c.l.b16 %v114
    %v727 = vunpack.c.h.b16 %v114
    %v728 = vunpack.c.l.b16 %v115
    %v729 = vunpack.c.h.b16 %v115
    %v730 = vunpack.c.l.b16 %v116
    %v731 = vunpack.c.h.b16 %v116
    %v732 = vunpack.c.l.b16 %v117
    %v733 = vunpack.c.h.b16 %v117
    %v734 = vunpack.c.l.b16 %v118
    %v735 = vunpack.c.h.b16 %v118
    %v736 = vunpack.c.l.b16 %v119
    %v737 = vunpack.c.h.b16 %v119
    %v738 = vunpack.c.l.b16 %v120
    %v739 = vunpack.c.h.b16 %v120
    %v740 = vunpack.c.l.b16 %v121
    %v741 = vunpack.c.h.b16 %v121
    %v742 = vunpack.c.l.b16 %v122
    %v743 = vunpack.c.h.b16 %v122
    %v744 = vunpack.c.l.b16 %v123
    %v745 = vunpack.c.h.b16 %v123
    %v746 = vunpack.c.l.b16 %v124
    %v747 = vunpack.c.h.b16 %v124
    %v748 = vunpack.c.l.b16 %v125
    %v749 = vunpack.c.h.b16 %v125
    %v750 = vunpack.c.l.b16 %v126
    %v751 = vunpack.c.h.b16 %v126
    %v752 = vunpack.c.l.b16 %v127
    %v753 = vunpack.c.h.b16 %v127
    %v754 = vunpack.c.l.b16 %v128
    %v755 = vunpack.c.h.b16 %v128
    %v756 = vunpack.c.l.b16 %v129
    %v757 = vunpack.c.h.b16 %v129
    %v758 = vunpack.c.l.b16 %v130
    %v759 = vunpack.c.h.b16 %v130
    %v760 = vunpack.c.l.b16 %v131
    %v761 = vunpack.c.h.b16 %v131
    %v762 = vunpack.c.l.b16 %v132
    %v763 = vunpack.c.h.b16 %v132
    %v764 = vunpack.c.l.b16 %v133
    %v765 = vunpack.c.h.b16 %v133
    %v766 = vunpack.c.l.b16 %v134
    %v767 = vunpack.c.h.b16 %v134
    %v768 = vunpack.c.l.b16 %v135
    %v769 = vunpack.c.h.b16 %v135
    %v770 = vunpack.c.l.b16 %v136
    %v771 = vunpack.c.h.b16 %v136
    %v772 = vunpack.c.l.b16 %v137
    %v773 = vunpack.c.h.b16 %v137
    %v774 = vunpack.c.l.b16 %v138
    %v775 = vunpack.c.h.b16 %v138
    %v776 = vunpack.c.l.b16 %v139
    %v777 = vunpack.c.h.b16 %v139
    %v778 = vunpack.c.l.b16 %v140
    %v779 = vunpack.c.h.b16 %v140
    %v780 = vunpack.c.l.b16 %v141
    %v781 = vunpack.c.h.b16 %v141
    %v782 = vunpack.c.l.b16 %v142
    %v783 = vunpack.c.h.b16 %v142
    %v784 = vunpack.c.l.b16 %v143
    %v785 = vunpack.c.h.b16 %v143
    %v786 = vunpack.c.l.b16 %v144
    %v787 = vunpack.c.h.b16 %v144
    %v788 = vunpack.c.l.b16 %v145
    %v789 = vunpack.c.h.b16 %v145
    %v790 = vunpack.c.l.b16 %v146
    %v791 = vunpack.c.h.b16 %v146
    %v792 = vunpack.c.l.b16 %v147
    %v793 = vunpack.c.h.b16 %v147
    %v794 = vunpack.c.l.b16 %v148
    %v795 = vunpack.c.h.b16 %v148
    %v796 = vunpack.c.l.b16 %v149
    %v797 = vunpack.c.h.b16 %v149
    %v798 = vunpack.c.l.b16 %v150
    %v799 = vunpack.c.h.b16 %v150
    %v800 = vunpack.c.l.b16 %v151
    %v801 = vunpack.c.h.b16 %v151
    %v802 = vunpack.c.l.b16 %v152
    %v803 = vunpack.c.h.b16 %v152
    %v804 = vunpack.c.l.b16 %v153
    %v805 = vunpack.c.h.b16 %v153
    %v806 = vunpack.c.l.b16 %v154
    %v807 = vunpack.c.h.b16 %v154
    %v808 = vunpack.c.l.b16 %v155
    %v809 = vunpack.c.h.b16 %v155
    %v810 = vunpack.c.l.b16 %v156
    %v811 = vunpack.c.h.b16 %v156
    %v812 = vunpack.c.l.b16 %v157
    %v813 = vunpack.c.h.b16 %v157
    %v814 = vunpack.c.l.b16 %v158
    %v815 = vunpack.c.h.b16 %v158
    %v816 = vunpack.c.l.b16 %v159
    %v817 = vunpack.c.h.b16 %v159
    %v818 = vunpack.c.l.b16 %v160
    %v819 = vunpack.c.h.b16 %v160
    %v820 = vunpack.c.l.b16 %v161
    %v821 = vunpack.c.h.b16 %v161
    %v822 = vunpack.c.l.b16 %v162
    %v823 = vunpack.c.h.b16 %v162
    %v824 = vunpack.c.l.b16 %v163
    %v825 = vunpack.c.h.b16 %v163
    %v826 = vunpack.c.l.b16 %v164
    %v827 = vunpack.c.h.b16 %v164
    %v828 = vunpack.c.l.b16 %v165
    %v829 = vunpack.c.h.b16 %v165
    %v830 = vunpack.c.l.b16 %v166
    %v831 = vunpack.c.h.b16 %v166
    %v832 = vunpack.c.l.b16 %v167
    %v833 = vunpack.c.h.b16 %v167
    %v834 = vunpack.c.l.b16 %v168
    %v835 = vunpack.c.h.b16 %v168
    %v836 = vunpack.c.l.b16 %v169
    %v837 = vunpack.c.h.b16 %v169
    %v838 = vunpack.c.l.b16 %v170
    %v839 = vunpack.c.h.b16 %v170
    %v840 = vunpack.c.l.b16 %v171
    %v841 = vunpack.c.h.b16 %v171
    %v842 = vunpack.c.l.b16 %v172
    %v843 = vunpack.c.h.b16 %v172
    %v844 = vunpack.c.l.b16 %v173
    %v845 = vunpack.c.h.b16 %v173
    %v846 = vunpack.c.l.b16 %v174
    %v847 = vunpack.c.h.b16 %v174
    %v848 = vunpack.c.l.b16 %v175
    %v849 = vunpack.c.h.b16 %v175
    %v850 = vunpack.c.l.b16 %v176
    %v851 = vunpack.c.h.b16 %v176
    %v852 = vunpack.c.l.b16 %v177
    %v853 = vunpack.c.h.b16 %v177
    %v854 = vunpack.c.l.b16 %v178
    %v855 = vunpack.c.h.b16 %v178
    %v856 = vunpack.c.l.b16 %v179
    %v857 = vunpack.c.h.b16 %v179
    %v858 = vunpack.c.l.b16 %v180
    %v859 = vunpack.c.h.b16 %v180
    %v860 = vunpack.c.l.b16 %v181
    %v861 = vunpack.c.h.b16 %v181
    %v862 = vunpack.c.l.b16 %v182
    %v863 = vunpack.c.h.b16 %v182
    %v864 = vunpack.c.l.b16 %v183
    %v865 = vunpack.c.h.b16 %v183
    %v866 = vunpack.c.l.b16 %v184
    %v867 = vunpack.c.h.b16 %v184
    %v868 = vunpack.c.l.b16 %v185
    %v869 = vunpack.c.h.b16 %v185
    %v870 = vunpack.c.l.b16 %v186
    %v871 = vunpack.c.h.b16 %v186
    %v872 = vunpack.c.l.b16 %v187
    %v873 = vunpack.c.h.b16 %v187
    %v874 = vunpack.c.l.b16 %v188
    %v875 = vunpack.c.h.b16 %v188
    %v876 = vunpack.c.l.b16 %v189
    %v877 = vunpack.c.h.b16 %v189
    %v878 = vunpack.c.l.b16 %v190
    %v879 = vunpack.c.h.b16 %v190
    %v880 = vunpack.c.l.b16 %v191
    %v881 = vunpack.c.h.b16 %v191
    %v882 = vunpack.c.l.b16 %v192
    %v883 = vunpack.c.h.b16 %v192
    %v884 = vunpack.c.l.b16 %v193
    %v885 = vunpack.c.h.b16 %v193
    %v886 = vunpack.c.l.b16 %v194
    %v887 = vunpack.c.h.b16 %v194
    %v888 = vunpack.c.l.b16 %v195
    %v889 = vunpack.c.h.b16 %v195
    %v890 = vunpack.c.l.b16 %v196
    %v891 = vunpack.c.h.b16 %v196
    %v892 = vunpack.c.l.b16 %v197
    %v893 = vunpack.c.h.b16 %v197
    %v894 = vunpack.c.l.b16 %v198
    %v895 = vunpack.c.h.b16 %v198
    %v896 = vunpack.c.l.b16 %v199
    %v897 = vunpack.c.h.b16 %v199
    %v898 = vunpack.c.l.b16 %v200
    %v899 = vunpack.c.h.b16 %v200
    %v900 = vunpack.c.l.b16 %v201
    %v901 = vunpack.c.h.b16 %v201
    %v902 = vunpack.c.l.b16 %v202
    %v903 = vunpack.c.h.b16 %v202
    %v904 = vunpack.c.l.b16 %v203
    %v905 = vunpack.c.h.b16 %v203
    %v906 = vunpack.c.l.b16 %v204
    %v907 = vunpack.c.h.b16 %v204
    %v908 = vunpack.c.l.b16 %v205
    %v909 = vunpack.c.h.b16 %v205
    %v910 = vunpack.c.l.b16 %v206
    %v911 = vunpack.c.h.b16 %v206
    %v912 = vunpack.c.l.b16 %v207
    %v913 = vunpack.c.h.b16 %v207
    %v914 = vunpack.c.l.b16 %v208
    %v915 = vunpack.c.h.b16 %v208
    %v916 = vunpack.c.l.b16 %v209
    %v917 = vunpack.c.h.b16 %v209
    %v918 = vunpack.c.l.b16 %v210
    %v919 = vunpack.c.h.b16 %v210
    %v920 = vunpack.c.l.b16 %v211
    %v921 = vunpack.c.h.b16 %v211
    %v922 = vunpack.c.l.b16 %v212
    %v923 = vunpack.c.h.b16 %v212
    %v924 = vunpack.c.l.b16 %v213
    %v925 = vunpack.c.h.b16 %v213
    %v926 = vunpack.c.l.b16 %v214
    %v927 = vunpack.c.h.b16 %v214
    %v928 = vunpack.c.l.b16 %v215
    %v929 = vunpack.c.h.b16 %v215
    %v930 = vunpack.c.l.b16 %v216
    %v931 = vunpack.c.h.b16 %v216
    %v932 = vunpack.c.l.b16 %v217
    %v933 = vunpack.c.h.b16 %v217
    %v934 = vunpack.c.l.b16 %v218
    %v935 = vunpack.c.h.b16 %v218
    %v936 = vunpack.c.l.b16 %v219
    %v937 = vunpack.c.h.b16 %v219
    %v938 = vunpack.c.l.b16 %v220
    %v939 = vunpack.c.h.b16 %v220
    %v940 = vunpack.c.l.b16 %v221
    %v941 = vunpack.c.h.b16 %v221
    %v942 = vunpack.c.l.b16 %v222
    %v943 = vunpack.c.h.b16 %v222
    %v944 = vunpack.c.l.b16 %v223
    %v945 = vunpack.c.h.b16 %v223
    %v946 = vunpack.c.l.b16 %v224
    %v947 = vunpack.c.h.b16 %v224
    %v948 = vunpack.c.l.b16 %v225
    %v949 = vunpack.c.h.b16 %v225
    %v950 = vunpack.c.l.b16 %v226
    %v951 = vunpack.c.h.b16 %v226
    %v952 = vunpack.c.l.b16 %v227
    %v953 = vunpack.c.h.b16 %v227
    %v954 = vunpack.c.l.b16 %v228
    %v955 = vunpack.c.h.b16 %v228
    %v956 = vunpack.c.l.b16 %v229
    %v957 = vunpack.c.h.b16 %v229
    %v958 = vunpack.c.l.b16 %v230
    %v959 = vunpack.c.h.b16 %v230
    %v960 = vunpack.c.l.b16 %v231
    %v961 = vunpack.c.h.b16 %v231
    %v962 = vunpack.c.l.b16 %v232
    %v963 = vunpack.c.h.b16 %v232
    %v964 = vunpack.c.l.b16 %v233
    %v965 = vunpack.c.h.b16 %v233
    %v966 = vunpack.c.l.b16 %v234
    %v967 = vunpack.c.h.b16 %v234
    %v968 = vunpack.c.l.b16 %v235
    %v969 = vunpack.c.h.b16 %v235
    %v970 = vunpack.c.l.b16 %v236
    %v971 = vunpack.c.h.b16 %v236
    %v972 = vunpack.c.l.b16 %v237
    %v973 = vunpack.c.h.b16 %v237
    %v974 = vunpack.c.l.b16 %v238
    %v975 = vunpack.c.h.b16 %v238
    %v976 = vunpack.c.l.b16 %v239
    %v977 = vunpack.c.h.b16 %v239
    %v978 = vunpack.c.l.b16 %v240
    %v979 = vunpack.c.h.b16 %v240
    %v980 = vunpack.c.l.b16 %v241
    %v981 = vunpack.c.h.b16 %v241
    %v982 = vunpack.c.l.b16 %v242
    %v983 = vunpack.c.h.b16 %v242
    %v984 = vunpack.c.l.b16 %v243
    %v985 = vunpack.c.h.b16 %v243
    %v986 = vunpack.c.l.b16 %v244
    %v987 = vunpack.c.h.b16 %v244
    %v988 = vunpack.c.l.b16 %v245
    %v989 = vunpack.c.h.b16 %v245
    %v990 = vunpack.c.l.b16 %v246
    %v991 = vunpack.c.h.b16 %v246
    %v992 = vunpack.c.l.b16 %v247
    %v993 = vunpack.c.h.b16 %v247
    %v994 = vunpack.c.l.b16 %v248
    %v995 = vunpack.c.h.b16 %v248
    %v996 = vunpack.c.l.b16 %v249
    %v997 = vunpack.c.h.b16 %v249
    %v998 = vunpack.c.l.b16 %v250
    %v999 = vunpack.c.h.b16 %v250
    %v1000 = vunpack.c.l.b16 %v251
    %v1001 = vunpack.c.h.b16 %v251
    %v1002 = vunpack.c.l.b16 %v252
    %v1003 = vunpack.c.h.b16 %v252
    %v1004 = vunpack.c.l.b16 %v253
    %v1005 = vunpack.c.h.b16 %v253
    %v1006 = vunpack.c.l.b16 %v254
    %v1007 = vunpack.c.h.b16 %v254
    %v1008 = vunpack.c.l.b16 %v255
    %v1009 = vunpack.c.h.b16 %v255
    %v1010 = vunpack.c.l.b16 %v256
    %v1011 = vunpack.c.h.b16 %v256
    %v1012 = vunpack.c.l.b16 %v257
    %v1013 = vunpack.c.h.b16 %v257
    %v1014 = vunpack.c.l.b16 %v258
    %v1015 = vunpack.c.h.b16 %v258
    %v1016 = vunpack.c.l.b16 %v259
    %v1017 = vunpack.c.h.b16 %v259
    %v1018 = vunpack.c.l.b16 %v260
    %v1019 = vunpack.c.h.b16 %v260
    %v1020 = vunpack.c.l.b16 %v261
    %v1021 = vunpack.c.h.b16 %v261
    %v1022 = vunpack.c.l.b16 %v262
    %v1023 = vunpack.c.h.b16 %v262
    %v1024 = vunpack.c.l.b16 %v263
    %v1025 = vunpack.c.h.b16 %v263
    %v1026 = vunpack.c.l.b16 %v264
    %v1027 = vunpack.c.h.b16 %v264
    %v1028 = vunpack.c.l.b16 %v265
    %v1029 = vunpack.c.h.b16 %v265
    %v1030 = vunpack.c.l.b16 %v266
    %v1031 = vunpack.c.h.b16 %v266
    %v1032 = vunpack.c.l.b16 %v267
    %v1033 = vunpack.c.h.b16 %v267
    %v1034 = vunpack.c.l.b16 %v268
    %v1035 = vunpack.c.h.b16 %v268
    %v1036 = vunpack.c.l.b16 %v269
    %v1037 = vunpack.c.h.b16 %v269
    %v1038 = vunpack.c.l.b16 %v270
    %v1039 = vunpack.c.h.b16 %v270
    %v1040 = vunpack.c.l.b16 %v271
    %v1041 = vunpack.c.h.b16 %v271
    %v1042 = vunpack.c.l.b16 %v272
    %v1043 = vunpack.c.h.b16 %v272
    %v1044 = vunpack.c.l.b16 %v273
    %v1045 = vunpack.c.h.b16 %v273
    %v1046 = vunpack.c.l.b16 %v274
    %v1047 = vunpack.c.h.b16 %v274
    %v1048 = vunpack.c.l.b16 %v275
    %v1049 = vunpack.c.h.b16 %v275
    %v1050 = vunpack.c.l.b16 %v276
    %v1051 = vunpack.c.h.b16 %v276
    %v1052 = vunpack.c.l.b16 %v277
    %v1053 = vunpack.c.h.b16 %v277
    %v1054 = vunpack.c.l.b16 %v278
    %v1055 = vunpack.c.h.b16 %v278
    %v1056 = vunpack.c.l.b16 %v279
    %v1057 = vunpack.c.h.b16 %v279
    %v1058 = vunpack.c.l.b16 %v280
    %v1059 = vunpack.c.h.b16 %v280
    %v1060 = vunpack.c.l.b16 %v281
    %v1061 = vunpack.c.h.b16 %v281
    %v1062 = vunpack.c.l.b16 %v282
    %v1063 = vunpack.c.h.b16 %v282
    %v1064 = vunpack.c.l.b16 %v283
    %v1065 = vunpack.c.h.b16 %v283
    %v1066 = vunpack.c.l.b16 %v284
    %v1067 = vunpack.c.h.b16 %v284
    %v1068 = vunpack.c.l.b16 %v285
    %v1069 = vunpack.c.h.b16 %v285
    %v1070 = vunpack.c.l.b16 %v286
    %v1071 = vunpack.c.h.b16 %v286
    %v1072 = vunpack.c.l.b16 %v287
    %v1073 = vunpack.c.h.b16 %v287
    %v1074 = vunpack.c.l.b16 %v288
    %v1075 = vunpack.c.h.b16 %v288
    %v1076 = vunpack.c.l.b16 %v289
    %v1077 = vunpack.c.h.b16 %v289
    %v1078 = vunpack.c.l.b16 %v290
    %v1079 = vunpack.c.h.b16 %v290
    %v1080 = vunpack.c.l.b16 %v291
    %v1081 = vunpack.c.h.b16 %v291
    %v1082 = vunpack.c.l.b16 %v292
    %v1083 = vunpack.c.h.b16 %v292
    %v1084 = vunpack.c.l.b16 %v293
    %v1085 = vunpack.c.h.b16 %v293
    %v1086 = vunpack.c.l.b16 %v294
    %v1087 = vunpack.c.h.b16 %v294
    %v1088 = vunpack.c.l.b16 %v295
    %v1089 = vunpack.c.h.b16 %v295
    %v1090 = vunpack.c.l.b16 %v296
    %v1091 = vunpack.c.h.b16 %v296
    %v1092 = vunpack.c.l.b16 %v297
    %v1093 = vunpack.c.h.b16 %v297
    %v1094 = vunpack.c.l.b16 %v298
    %v1095 = vunpack.c.h.b16 %v298
    %v1096 = vunpack.c.l.b16 %v299
    %v1097 = vunpack.c.h.b16 %v299
    %v1098 = vunpack.c.l.b16 %v300
    %v1099 = vunpack.c.h.b16 %v300
    %v1100 = vunpack.c.l.b16 %v301
    %v1101 = vunpack.c.h.b16 %v301
    %v1102 = vunpack.c.l.b16 %v302
    %v1103 = vunpack.c.h.b16 %v302
    %v1104 = vunpack.c.l.b16 %v303
    %v1105 = vunpack.c.h.b16 %v303
    %v1106 = vunpack.c.l.b16 %v304
    %v1107 = vunpack.c.h.b16 %v304
    %v1108 = vunpack.c.l.b16 %v305
    %v1109 = vunpack.c.h.b16 %v305
    %v1110 = vunpack.c.l.b16 %v306
    %v1111 = vunpack.c.h.b16 %v306
    %v1112 = vunpack.c.l.b16 %v307
    %v1113 = vunpack.c.h.b16 %v307
    %v1114 = vunpack.c.l.b16 %v308
    %v1115 = vunpack.c.h.b16 %v308
    %v1116 = vunpack.c.l.b16 %v309
    %v1117 = vunpack.c.h.b16 %v309
    %v1118 = vunpack.c.l.b16 %v310
    %v1119 = vunpack.c.h.b16 %v310
    %v1120 = vunpack.c.l.b16 %v311
    %v1121 = vunpack.c.h.b16 %v311
    %v1122 = vunpack.c.l.b16 %v312
    %v1123 = vunpack.c.h.b16 %v312
    %v1124 = vunpack.c.l.b16 %v313
    %v1125 = vunpack.c.h.b16 %v313
    %v1126 = vunpack.c.l.b16 %v314
    %v1127 = vunpack.c.h.b16 %v314
    %v1128 = vunpack.c.l.b16 %v315
    %v1129 = vunpack.c.h.b16 %v315
    %v1130 = vunpack.c.l.b16 %v316
    %v1131 = vunpack.c.h.b16 %v316
    %v1132 = vunpack.c.l.b16 %v317
    %v1133 = vunpack.c.h.b16 %v317
    %v1134 = vunpack.c.l.b16 %v318
    %v1135 = vunpack.c.h.b16 %v318
    %v1136 = vunpack.c.l.b16 %v319
    %v1137 = vunpack.c.h.b16 %v319
    %v1138 = vunpack.c.l.b16 %v320
    %v1139 = vunpack.c.h.b16 %v320
    %v1140 = vunpack.c.l.b16 %v321
    %v1141 = vunpack.c.h.b16 %v321
    %v1142 = vunpack.c.l.b16 %v322
    %v1143 = vunpack.c.h.b16 %v322
    %v1144 = vunpack.c.l.b16 %v323
    %v1145 = vunpack.c.h.b16 %v323
    %v1146 = vunpack.c.l.b16 %v324
    %v1147 = vunpack.c.h.b16 %v324
    %v1148 = vunpack.c.l.b16 %v325
    %v1149 = vunpack.c.h.b16 %v325
    %v1150 = vunpack.c.l.b16 %v326
    %v1151 = vunpack.c.h.b16 %v326
    %v1152 = vunpack.c.l.b16 %v327
    %v1153 = vunpack.c.h.b16 %v327
    %v1154 = vunpack.c.l.b16 %v328
    %v1155 = vunpack.c.h.b16 %v328
    %v1156 = vunpack.c.l.b16 %v329
    %v1157 = vunpack.c.h.b16 %v329
    %v1158 = vunpack.c.l.b16 %v330
    %v1159 = vunpack.c.h.b16 %v330
    %v1160 = vunpack.c.l.b16 %v331
    %v1161 = vunpack.c.h.b16 %v331
    %v1162 = vunpack.c.l.b16 %v332
    %v1163 = vunpack.c.h.b16 %v332
    %v1164 = vunpack.c.l.b16 %v333
    %v1165 = vunpack.c.h.b16 %v333
    %v1166 = vunpack.c.l.b16 %v334
    %v1167 = vunpack.c.h.b16 %v334
    %v1168 = vunpack.c.l.b16 %v335
    %v1169 = vunpack.c.h.b16 %v335
    %v1170 = vunpack.c.l.b16 %v336
    %v1171 = vunpack.c.h.b16 %v336
    %v1172 = vunpack.c.l.b16 %v337
    %v1173 = vunpack.c.h.b16 %v337
    %v1174 = vunpack.c.l.b16 %v338
    %v1175 = vunpack.c.h.b16 %v338
    %v1176 = vunpack.c.l.b16 %v339
    %v1177 = vunpack.c.h.b16 %v339
    %v1178 = vunpack.c.l.b16 %v340
    %v1179 = vunpack.c.h.b16 %v340
    %v1180 = vunpack.c.l.b16 %v341
    %v1181 = vunpack.c.h.b16 %v341
    %v1182 = vunpack.c.l.b16 %v342
    %v1183 = vunpack.c.h.b16 %v342
    %v1184 = vunpack.c.l.b16 %v343
    %v1185 = vunpack.c.h.b16 %v343
    %v1186 = vunpack.c.l.b16 %v344
    %v1187 = vunpack.c.h.b16 %v344
    %v1188 = vunpack.c.l.b16 %v345
    %v1189 = vunpack.c.h.b16 %v345
    %v1190 = vunpack.c.l.b16 %v346
    %v1191 = vunpack.c.h.b16 %v346
    %v1192 = vunpack.c.l.b16 %v347
    %v1193 = vunpack.c.h.b16 %v347
    %v1194 = vunpack.c.l.b16 %v348
    %v1195 = vunpack.c.h.b16 %v348
    %v1196 = vunpack.c.l.b16 %v349
    %v1197 = vunpack.c.h.b16 %v349
    %v1198 = vunpack.c.l.b16 %v350
    %v1199 = vunpack.c.h.b16 %v350
    %v1200 = vunpack.c.l.b16 %v351
    %v1201 = vunpack.c.h.b16 %v351
    %v1202 = vunpack.c.l.b16 %v352
    %v1203 = vunpack.c.h.b16 %v352
    %v1204 = vunpack.c.l.b16 %v353
    %v1205 = vunpack.c.h.b16 %v353
    %v1206 = vunpack.c.l.b16 %v354
    %v1207 = vunpack.c.h.b16 %v354
    %v1208 = vunpack.c.l.b16 %v355
    %v1209 = vunpack.c.h.b16 %v355
    %v1210 = vunpack.c.l.b16 %v356
    %v1211 = vunpack.c.h.b16 %v356
    %v1212 = vunpack.c.l.b16 %v357
    %v1213 = vunpack.c.h.b16 %v357
    %v1214 = vunpack.c.l.b16 %v358
    %v1215 = vunpack.c.h.b16 %v358
    %v1216 = vunpack.c.l.b16 %v359
    %v1217 = vunpack.c.h.b16 %v359
    %v1218 = vunpack.c.l.b16 %v360
    %v1219 = vunpack.c.h.b16 %v360
    %v1220 = vunpack.c.l.b16 %v361
    %v1221 = vunpack.c.h.b16 %v361
    %v1222 = vunpack.c.l.b16 %v362
    %v1223 = vunpack.c.h.b16 %v362
    %v1224 = vunpack.c.l.b16 %v363
    %v1225 = vunpack.c.h.b16 %v363
    %v1226 = vunpack.c.l.b16 %v364
    %v1227 = vunpack.c.h.b16 %v364
    %v1228 = vunpack.c.l.b16 %v365
    %v1229 = vunpack.c.h.b16 %v365
    %v1230 = vunpack.c.l.b16 %v366
    %v1231 = vunpack.c.h.b16 %v366
    %v1232 = vunpack.c.l.b16 %v367
    %v1233 = vunpack.c.h.b16 %v367
    %v1234 = vunpack.c.l.b16 %v368
    %v1235 = vunpack.c.h.b16 %v368
    %v1236 = vunpack.c.l.b16 %v369
    %v1237 = vunpack.c.h.b16 %v369
    %v1238 = vunpack.c.l.b16 %v370
    %v1239 = vunpack.c.h.b16 %v370
    %v1240 = vunpack.c.l.b16 %v371
    %v1241 = vunpack.c.h.b16 %v371
    %v1242 = vunpack.c.l.b16 %v372
    %v1243 = vunpack.c.h.b16 %v372
    %v1244 = vunpack.c.l.b16 %v373
    %v1245 = vunpack.c.h.b16 %v373
    %v1246 = vunpack.c.l.b16 %v374
    %v1247 = vunpack.c.h.b16 %v374
    %v1248 = vunpack.c.l.b16 %v375
    %v1249 = vunpack.c.h.b16 %v375
    %v1250 = vunpack.c.l.b16 %v376
    %v1251 = vunpack.c.h.b16 %v376
    %v1252 = vunpack.c.l.b16 %v377
    %v1253 = vunpack.c.h.b16 %v377
    %v1254 = vunpack.c.l.b16 %v378
    %v1255 = vunpack.c.h.b16 %v378
    %v1256 = vunpack.c.l.b16 %v379
    %v1257 = vunpack.c.h.b16 %v379
    %v1258 = vunpack.c.l.b16 %v380
    %v1259 = vunpack.c.h.b16 %v380
    %v1260 = vunpack.c.l.b16 %v381
    %v1261 = vunpack.c.h.b16 %v381
    %v1262 = vunpack.c.l.b16 %v382
    %v1263 = vunpack.c.h.b16 %v382
    %v1264 = vunpack.c.l.b16 %v383
    %v1265 = vunpack.c.h.b16 %v383
    %v1266 = vunpack.c.l.b16 %v384
    %v1267 = vunpack.c.h.b16 %v384
    %v1268 = vunpack.c.l.b16 %v385
    %v1269 = vunpack.c.h.b16 %v385
    %v1270 = vunpack.c.l.b16 %v386
    %v1271 = vunpack.c.h.b16 %v386
    %v1272 = vunpack.c.l.b16 %v387
    %v1273 = vunpack.c.h.b16 %v387
    %v1274 = vunpack.c.l.b16 %v388
    %v1275 = vunpack.c.h.b16 %v388
    %v1276 = vunpack.c.l.b16 %v389
    %v1277 = vunpack.c.h.b16 %v389
    %v1278 = vunpack.c.l.b16 %v390
    %v1279 = vunpack.c.h.b16 %v390
    %v1280 = vunpack.c.l.b16 %v391
    %v1281 = vunpack.c.h.b16 %v391
    %v1282 = vunpack.c.l.b16 %v392
    %v1283 = vunpack.c.h.b16 %v392
    %v1284 = vunpack.c.l.b16 %v393
    %v1285 = vunpack.c.h.b16 %v393
    %v1286 = vunpack.c.l.b16 %v394
    %v1287 = vunpack.c.h.b16 %v394
    %v1288 = vunpack.c.l.b16 %v395
    %v1289 = vunpack.c.h.b16 %v395
    %v1290 = vunpack.c.l.b16 %v396
    %v1291 = vunpack.c.h.b16 %v396
    %v1292 = vunpack.c.l.b16 %v397
    %v1293 = vunpack.c.h.b16 %v397
    %v1294 = vunpack.c.l.b16 %v398
    %v1295 = vunpack.c.h.b16 %v398
    %v1296 = vunpack.c.l.b16 %v399
    %v1297 = vunpack.c.h.b16 %v399
    %v1298 = vunpack.c.l.b16 %v400
    %v1299 = vunpack.c.h.b16 %v400
    %v1300 = vunpack.c.l.b16 %v401
    %v1301 = vunpack.c.h.b16 %v401
    %v1302 = vpack.c.b16 %v706, %v702
    %v1303 = vpack.c.b16 %v707, %v703
    %v1304 = vpack.c.b16 %v708, %v704
    %v1305 = vpack.c.b16 %v709, %v705
    %v1306 = vpack.c.b16 %v714, %v710
    %v1307 = vpack.c.b16 %v715, %v711
    %v1308 = vpack.c.b16 %v716, %v712
    %v1309 = vpack.c.b16 %v717, %v713
    %v1310 = vpack.c.b16 %v722, %v718
    %v1311 = vpack.c.b16 %v723, %v719
    %v1312 = vpack.c.b16 %v724, %v720
    %v1313 = vpack.c.b16 %v725, %v721
    %v1314 = vpack.c.b16 %v730, %v726
    %v1315 = vpack.c.b16 %v731, %v727
    %v1316 = vpack.c.b16 %v732, %v728
    %v1317 = vpack.c.b16 %v733, %v729
    %v1318 = vpack.c.b16 %v738, %v734
    %v1319 = vpack.c.b16 %v739, %v735
    %v1320 = vpack.c.b16 %v740, %v736
    %v1321 = vpack.c.b16 %v741, %v737
    %v1322 = vpack.c.b16 %v746, %v742
    %v1323 = vpack.c.b16 %v747, %v743
    %v1324 = vpack.c.b16 %v748, %v744
    %v1325 = vpack.c.b16 %v749, %v745
    %v1326 = vpack.c.b16 %v754, %v750
    %v1327 = vpack.c.b16 %v755, %v751
    %v1328 = vpack.c.b16 %v756, %v752
    %v1329 = vpack.c.b16 %v757, %v753
    %v1330 = vpack.c.b16 %v762, %v758
    %v1331 = vpack.c.b16 %v763, %v759
    %v1332 = vpack.c.b16 %v764, %v760
    %v1333 = vpack.c.b16 %v765, %v761
    %v1334 = vpack.c.b16 %v770, %v766
    %v1335 = vpack.c.b16 %v771, %v767
    %v1336 = vpack.c.b16 %v772, %v768
    %v1337 = vpack.c.b16 %v773, %v769
    %v1338 = vpack.c.b16 %v778, %v774
    %v1339 = vpack.c.b16 %v779, %v775
    %v1340 = vpack.c.b16 %v780, %v776
    %v1341 = vpack.c.b16 %v781, %v777
    %v1342 = vpack.c.b16 %v786, %v782
    %v1343 = vpack.c.b16 %v787, %v783
    %v1344 = vpack.c.b16 %v788, %v784
    %v1345 = vpack.c.b16 %v789, %v785
    %v1346 = vpack.c.b16 %v794, %v790
    %v1347 = vpack.c.b16 %v795, %v791
    %v1348 = vpack.c.b16 %v796, %v792
    %v1349 = vpack.c.b16 %v797, %v793
    %v1350 = vpack.c.b16 %v802, %v798
    %v1351 = vpack.c.b16 %v803, %v799
    %v1352 = vpack.c.b16 %v804, %v800
    %v1353 = vpack.c.b16 %v805, %v801
    %v1354 = vpack.c.b16 %v810, %v806
    %v1355 = vpack.c.b16 %v811, %v807
    %v1356 = vpack.c.b16 %v812, %v808
    %v1357 = vpack.c.b16 %v813, %v809
    %v1358 = vpack.c.b16 %v818, %v814
    %v1359 = vpack.c.b16 %v819, %v815
    %v1360 = vpack.c.b16 %v820, %v816
    %v1361 = vpack.c.b16 %v821, %v817
    %v1362 = vpack.c.b16 %v826, %v822
    %v1363 = vpack.c.b16 %v827, %v823
    %v1364 = vpack.c.b16 %v828, %v824
    %v1365 = vpack.c.b16 %v829, %v825
    %v1366 = vpack.c.b16 %v834, %v830
    %v1367 = vpack.c.b16 %v835, %v831
    %v1368 = vpack.c.b16 %v836, %v832
    %v1369 = vpack.c.b16 %v837, %v833
    %v1370 = vpack.c.b16 %v842, %v838
    %v1371 = vpack.c.b16 %v843, %v839
    %v1372 = vpack.c.b16 %v844, %v840
    %v1373 = vpack.c.b16 %v845, %v841
    %v1374 = vpack.c.b16 %v850, %v846
    %v1375 = vpack.c.b16 %v851, %v847
    %v1376 = vpack.c.b16 %v852, %v848
    %v1377 = vpack.c.b16 %v853, %v849
    %v1378 = vpack.c.b16 %v858, %v854
    %v1379 = vpack.c.b16 %v859, %v855
    %v1380 = vpack.c.b16 %v860, %v856
    %v1381 = vpack.c.b16 %v861, %v857
    %v1382 = vpack.c.b16 %v866, %v862
    %v1383 = vpack.c.b16 %v867, %v863
    %v1384 = vpack.c.b16 %v868, %v864
    %v1385 = vpack.c.b16 %v869, %v865
    %v1386 = vpack.c.b16 %v874, %v870
    %v1387 = vpack.c.b16 %v875, %v871
    %v1388 = vpack.c.b16 %v876, %v872
    %v1389 = vpack.c.b16 %v877, %v873
    %v1390 = vpack.c.b16 %v882, %v878
    %v1391 = vpack.c.b16 %v883, %v879
    %v1392 = vpack.c.b16 %v884, %v880
    %v1393 = vpack.c.b16 %v885, %v881
    %v1394 = vpack.c.b16 %v890, %v886
    %v1395 = vpack.c.b16 %v891, %v887
    %v1396 = vpack.c.b16 %v892, %v888
    %v1397 = vpack.c.b16 %v893, %v889
    %v1398 = vpack.c.b16 %v898, %v894
    %v1399 = vpack.c.b16 %v899, %v895
    %v1400 = vpack.c.b16 %v900, %v896
    %v1401 = vpack.c.b16 %v901, %v897
    %v1402 = vpack.c.b16 %v906, %v902
    %v1403 = vpack.c.b16 %v907, %v903
    %v1404 = vpack.c.b16 %v908, %v904
    %v1405 = vpack.c.b16 %v909, %v905
    %v1406 = vpack.c.b16 %v914, %v910
    %v1407 = vpack.c.b16 %v915, %v911
    %v1408 = vpack.c.b16 %v916, %v912
    %v1409 = vpack.c.b16 %v917, %v913
    %v1410 = vpack.c.b16 %v922, %v918
    %v1411 = vpack.c.b16 %v923, %v919
    %v1412 = vpack.c.b16 %v924, %v920
    %v1413 = vpack.c.b16 %v925, %v921
    %v1414 = vpack.c.b16 %v930, %v926
    %v1415 = vpack.c.b16 %v931, %v927
    %v1416 = vpack.c.b16 %v932, %v928
    %v1417 = vpack.c.b16 %v933, %v929
    %v1418 = vpack.c.b16 %v938, %v934
    %v1419 = vpack.c.b16 %v939, %v935
    %v1420 = vpack.c.b16 %v940, %v936
    %v1421 = vpack.c.b16 %v941, %v937
    %v1422 = vpack.c.b16 %v946, %v942
    %v1423 = vpack.c.b16 %v947, %v943
    %v1424 = vpack.c.b16 %v948, %v944
    %v1425 = vpack.c.b16 %v949, %v945
    %v1426 = vpack.c.b16 %v954, %v950
    %v1427 = vpack.c.b16 %v955, %v951
    %v1428 = vpack.c.b16 %v956, %v952
    %v1429 = vpack.c.b16 %v957, %v953
    %v1430 = vpack.c.b16 %v962, %v958
    %v1431 = vpack.c.b16 %v963, %v959
    %v1432 = vpack.c.b16 %v964, %v960
    %v1433 = vpack.c.b16 %v965, %v961
    %v1434 = vpack.c.b16 %v970, %v966
    %v1435 = vpack.c.b16 %v971, %v967
    %v1436 = vpack.c.b16 %v972, %v968
    %v1437 = vpack.c.b16 %v973, %v969
    %v1438 = vpack.c.b16 %v978, %v974
    %v1439 = vpack.c.b16 %v979, %v975
    %v1440 = vpack.c.b16 %v980, %v976
    %v1441 = vpack.c.b16 %v981, %v977
    %v1442 = vpack.c.b16 %v986, %v982
    %v1443 = vpack.c.b16 %v987, %v983
    %v1444 = vpack.c.b16 %v988, %v984
    %v1445 = vpack.c.b16 %v989, %v985
    %v1446 = vpack.c.b16 %v994, %v990
    %v1447 = vpack.c.b16 %v995, %v991
    %v1448 = vpack.c.b16 %v996, %v992
    %v1449 = vpack.c.b16 %v997, %v993
    %v1450 = vpack.c.b16 %v1002, %v998
    %v1451 = vpack.c.b16 %v1003, %v999
    %v1452 = vpack.c.b16 %v1004, %v1000
    %v1453 = vpack.c.b16 %v1005, %v1001
    %v1454 = vpack.c.b16 %v1010, %v1006
    %v1455 = vpack.c.b16 %v1011, %v1007
    %v1456 = vpack.c.b16 %v1012, %v1008
    %v1457 = vpack.c.b16 %v1013, %v1009
    %v1458 = vpack.c.b16 %v1018, %v1014
    %v1459 = vpack.c.b16 %v1019, %v1015
    %v1460 = vpack.c.b16 %v1020, %v1016
    %v1461 = vpack.c.b16 %v1021, %v1017
    %v1462 = vpack.c.b16 %v1026, %v1022
    %v1463 = vpack.c.b16 %v1027, %v1023
    %v1464 = vpack.c.b16 %v1028, %v1024
    %v1465 = vpack.c.b16 %v1029, %v1025
    %v1466 = vpack.c.b16 %v1034, %v1030
    %v1467 = vpack.c.b16 %v1035, %v1031
    %v1468 = vpack.c.b16 %v1036, %v1032
    %v1469 = vpack.c.b16 %v1037, %v1033
    %v1470 = vpack.c.b16 %v1042, %v1038
    %v1471 = vpack.c.b16 %v1043, %v1039
    %v1472 = vpack.c.b16 %v1044, %v1040
    %v1473 = vpack.c.b16 %v1045, %v1041
    %v1474 = vpack.c.b16 %v1050, %v1046
    %v1475 = vpack.c.b16 %v1051, %v1047
    %v1476 = vpack.c.b16 %v1052, %v1048
    %v1477 = vpack.c.b16 %v1053, %v1049
    %v1478 = vpack.c.b16 %v1058, %v1054
    %v1479 = vpack.c.b16 %v1059, %v1055
    %v1480 = vpack.c.b16 %v1060, %v1056
    %v1481 = vpack.c.b16 %v1061, %v1057
    %v1482 = vpack.c.b16 %v1066, %v1062
    %v1483 = vpack.c.b16 %v1067, %v1063
    %v1484 = vpack.c.b16 %v1068, %v1064
    %v1485 = vpack.c.b16 %v1069, %v1065
    %v1486 = vpack.c.b16 %v1074, %v1070
    %v1487 = vpack.c.b16 %v1075, %v1071
    %v1488 = vpack.c.b16 %v1076, %v1072
    %v1489 = vpack.c.b16 %v1077, %v1073
    %v1490 = vpack.c.b16 %v1082, %v1078
    %v1491 = vpack.c.b16 %v1083, %v1079
    %v1492 = vpack.c.b16 %v1084, %v1080
    %v1493 = vpack.c.b16 %v1085, %v1081
    %v1494 = vpack.c.b16 %v1090, %v1086
    %v1495 = vpack.c.b16 %v1091, %v1087
    %v1496 = vpack.c.b16 %v1092, %v1088
    %v1497 = vpack.c.b16 %v1093, %v1089
    %v1498 = vpack.c.b16 %v1098, %v1094
    %v1499 = vpack.c.b16 %v1099, %v1095
    %v1500 = vpack.c.b16 %v1100, %v1096
    %v1501 = vpack.c.b16 %v1101, %v1097
    %v1502 = vpack.c.b16 %v1106, %v1102
    %v1503 = vpack.c.b16 %v1107, %v1103
    %v1504 = vpack.c.b16 %v1108, %v1104
    %v1505 = vpack.c.b16 %v1109, %v1105
    %v1506 = vpack.c.b16 %v1114, %v1110
    %v1507 = vpack.c.b16 %v1115, %v1111
    %v1508 = vpack.c.b16 %v1116, %v1112
    %v1509 = vpack.c.b16 %v1117, %v1113
    %v1510 = vpack.c.b16 %v1122, %v1118
    %v1511 = vpack.c.b16 %v1123, %v1119
    %v1512 = vpack.c.b16 %v1124, %v1120
    %v1513 = vpack.c.b16 %v1125, %v1121
    %v1514 = vpack.c.b16 %v1130, %v1126
    %v1515 = vpack.c.b16 %v1131, %v1127
    %v1516 = vpack.c.b16 %v1132, %v1128
    %v1517 = vpack.c.b16 %v1133, %v1129
    %v1518 = vpack.c.b16 %v1138, %v1134
    %v1519 = vpack.c.b16 %v1139, %v1135
    %v1520 = vpack.c.b16 %v1140, %v1136
    %v1521 = vpack.c.b16 %v1141, %v1137
    %v1522 = vpack.c.b16 %v1146, %v1142
    %v1523 = vpack.c.b16 %v1147, %v1143
    %v1524 = vpack.c.b16 %v1148, %v1144
    %v1525 = vpack.c.b16 %v1149, %v1145
    %v1526 = vpack.c.b16 %v1154, %v1150
    %v1527 = vpack.c.b16 %v1155, %v1151
    %v1528 = vpack.c.b16 %v1156, %v1152
    %v1529 = vpack.c.b16 %v1157, %v1153
    %v1530 = vpack.c.b16 %v1162, %v1158
    %v1531 = vpack.c.b16 %v1163, %v1159
    %v1532 = vpack.c.b16 %v1164, %v1160
    %v1533 = vpack.c.b16 %v1165, %v1161
    %v1534 = vpack.c.b16 %v1170, %v1166
    %v1535 = vpack.c.b16 %v1171, %v1167
    %v1536 = vpack.c.b16 %v1172, %v1168
    %v1537 = vpack.c.b16 %v1173, %v1169
    %v1538 = vpack.c.b16 %v1178, %v1174
    %v1539 = vpack.c.b16 %v1179, %v1175
    %v1540 = vpack.c.b16 %v1180, %v1176
    %v1541 = vpack.c.b16 %v1181, %v1177
    %v1542 = vpack.c.b16 %v1186, %v1182
    %v1543 = vpack.c.b16 %v1187, %v1183
    %v1544 = vpack.c.b16 %v1188, %v1184
    %v1545 = vpack.c.b16 %v1189, %v1185
    %v1546 = vpack.c.b16 %v1194, %v1190
    %v1547 = vpack.c.b16 %v1195, %v1191
    %v1548 = vpack.c.b16 %v1196, %v1192
    %v1549 = vpack.c.b16 %v1197, %v1193
    %v1550 = vpack.c.b16 %v1202, %v1198
    %v1551 = vpack.c.b16 %v1203, %v1199
    %v1552 = vpack.c.b16 %v1204, %v1200
    %v1553 = vpack.c.b16 %v1205, %v1201
    %v1554 = vpack.c.b16 %v1210, %v1206
    %v1555 = vpack.c.b16 %v1211, %v1207
    %v1556 = vpack.c.b16 %v1212, %v1208
    %v1557 = vpack.c.b16 %v1213, %v1209
    %v1558 = vpack.c.b16 %v1218, %v1214
    %v1559 = vpack.c.b16 %v1219, %v1215
    %v1560 = vpack.c.b16 %v1220, %v1216
    %v1561 = vpack.c.b16 %v1221, %v1217
    %v1562 = vpack.c.b16 %v1226, %v1222
    %v1563 = vpack.c.b16 %v1227, %v1223
    %v1564 = vpack.c.b16 %v1228, %v1224
    %v1565 = vpack.c.b16 %v1229, %v1225
    %v1566 = vpack.c.b16 %v1234, %v1230
    %v1567 = vpack.c.b16 %v1235, %v1231
    %v1568 = vpack.c.b16 %v1236, %v1232
    %v1569 = vpack.c.b16 %v1237, %v1233
    %v1570 = vpack.c.b16 %v1242, %v1238
    %v1571 = vpack.c.b16 %v1243, %v1239
    %v1572 = vpack.c.b16 %v1244, %v1240
    %v1573 = vpack.c.b16 %v1245, %v1241
    %v1574 = vpack.c.b16 %v1250, %v1246
    %v1575 = vpack.c.b16 %v1251, %v1247
    %v1576 = vpack.c.b16 %v1252, %v1248
    %v1577 = vpack.c.b16 %v1253, %v1249
    %v1578 = vpack.c.b16 %v1258, %v1254
    %v1579 = vpack.c.b16 %v1259, %v1255
    %v1580 = vpack.c.b16 %v1260, %v1256
    %v1581 = vpack.c.b16 %v1261, %v1257
    %v1582 = vpack.c.b16 %v1266, %v1262
    %v1583 = vpack.c.b16 %v1267, %v1263
    %v1584 = vpack.c.b16 %v1268, %v1264
    %v1585 = vpack.c.b16 %v1269, %v1265
    %v1586 = vpack.c.b16 %v1274, %v1270
    %v1587 = vpack.c.b16 %v1275, %v1271
    %v1588 = vpack.c.b16 %v1276, %v1272
    %v1589 = vpack.c.b16 %v1277, %v1273
    %v1590 = vpack.c.b16 %v1282, %v1278
    %v1591 = vpack.c.b16 %v1283, %v1279
    %v1592 = vpack.c.b16 %v1284, %v1280
    %v1593 = vpack.c.b16 %v1285, %v1281
    %v1594 = vpack.c.b16 %v1290, %v1286
    %v1595 = vpack.c.b16 %v1291, %v1287
    %v1596 = vpack.c.b16 %v1292, %v1288
    %v1597 = vpack.c.b16 %v1293, %v1289
    %v1598 = vpack.c.b16 %v1298, %v1294
    %v1599 = vpack.c.b16 %v1299, %v1295
    %v1600 = vpack.c.b16 %v1300, %v1296
    %v1601 = vpack.c.b16 %v1301, %v1297
    %vm1902 = vcmask 392192
    %v1904 = vsel %vm1902, %v101, 0
    %1906 = vmatprep.subr.bf16.mxu0 %v1331
    %1907 = vmatpush1.bf16.msra.mxu0 %v1330
    %1908 = vmatprep.subr.bf16.mxu0 %v1327
    %1909 = vmatpush1.bf16.msra.mxu0 %v1326
    %1910 = vmatprep.subr.bf16.mxu0 %v1323
    %1911 = vmatpush1.bf16.msra.mxu0 %v1322
    %1912 = vmatprep.subr.bf16.mxu0 %v1319
    %1913 = vmatpush1.bf16.msra.mxu0 %v1318
    %1914 = vmatprep.subr.bf16.mxu0 %v1315
    %1915 = vmatpush1.bf16.msra.mxu0 %v1314
    %1916 = vmatprep.subr.bf16.mxu0 %v1311
    %1917 = vmatpush1.bf16.msra.mxu0 %v1310
    %1918 = vmatprep.subr.bf16.mxu0 %v1307
    %1919 = vmatpush1.bf16.msra.mxu0 %v1306
    %1920 = vmatprep.subr.bf16.mxu0 %v1303
    %1921 = vmatpush1.bf16.msra.mxu0 %v1302
    %1922 = vmatprep.subr.bf16.mxu0 %v1363
    %1923 = vmatpush2.bf16.msra.mxu0 %v1362
    %1924 = vmatprep.subr.bf16.mxu0 %v1359
    %1925 = vmatpush2.bf16.msra.mxu0 %v1358
    %1926 = vmatprep.subr.bf16.mxu0 %v1355
    %1927 = vmatpush2.bf16.msra.mxu0 %v1354
    %1928 = vmatprep.subr.bf16.mxu0 %v1351
    %1929 = vmatpush2.bf16.msra.mxu0 %v1350
    %1930 = vmatprep.subr.bf16.mxu0 %v1347
    %1931 = vmatpush2.bf16.msra.mxu0 %v1346
    %1932 = vmatprep.subr.bf16.mxu0 %v1343
    %1933 = vmatpush2.bf16.msra.mxu0 %v1342
    %1934 = vmatprep.subr.bf16.mxu0 %v1339
    %1935 = vmatpush2.bf16.msra.mxu0 %v1338
    %1936 = vmatprep.subr.bf16.mxu0 %v1335
    %1937 = vmatpush2.bf16.msra.mxu0 %v1334
    %1938 = vmatprep.mubr.bf16.mxu0 %v93
    %1939 = vmatmul.mubr.bf16.gmra.mxu0 %v92
    %v1940 = vpop.f32.mrf.mxu0
    %v1941 = vadd.f32 0.0, %v1940
    %v1942 = vpop.f32.mrf.mxu0
    %v1943 = vadd.f32 0.0, %v1942
    %v1944 = vpop.f32.mrf.mxu0
    %v1945 = vadd.f32 0.0, %v1944
    %v1946 = vpop.f32.mrf.mxu0
    %v1947 = vadd.f32 0.0, %v1946
    %1948 = vdwg.mxu0
    %1949 = vmatprep.subr.bf16.mxu0 %v1395
    %1950 = vmatpush1.bf16.msra.mxu0 %v1394
    %1951 = vmatprep.subr.bf16.mxu0 %v1391
    %1952 = vmatpush1.bf16.msra.mxu0 %v1390
    %1953 = vmatprep.subr.bf16.mxu0 %v1387
    %1954 = vmatpush1.bf16.msra.mxu0 %v1386
    %1955 = vmatprep.subr.bf16.mxu0 %v1383
    %1956 = vmatpush1.bf16.msra.mxu0 %v1382
    %1957 = vmatprep.subr.bf16.mxu0 %v1379
    %1958 = vmatpush1.bf16.msra.mxu0 %v1378
    %1959 = vmatprep.subr.bf16.mxu0 %v1375
    %1960 = vmatpush1.bf16.msra.mxu0 %v1374
    %1961 = vmatprep.subr.bf16.mxu0 %v1371
    %1962 = vmatpush1.bf16.msra.mxu0 %v1370
    %1963 = vmatprep.subr.bf16.mxu0 %v1367
    %1964 = vmatpush1.bf16.msra.mxu0 %v1366
    %1965 = vmatprep.subr.bf16.mxu0 %v1427
    %1966 = vmatpush2.bf16.msra.mxu0 %v1426
    %1967 = vmatprep.subr.bf16.mxu0 %v1423
    %1968 = vmatpush2.bf16.msra.mxu0 %v1422
    %1969 = vmatprep.subr.bf16.mxu0 %v1419
    %1970 = vmatpush2.bf16.msra.mxu0 %v1418
    %1971 = vmatprep.subr.bf16.mxu0 %v1415
    %1972 = vmatpush2.bf16.msra.mxu0 %v1414
    %1973 = vmatprep.subr.bf16.mxu0 %v1411
    %1974 = vmatpush2.bf16.msra.mxu0 %v1410
    %1975 = vmatprep.subr.bf16.mxu0 %v1407
    %1976 = vmatpush2.bf16.msra.mxu0 %v1406
    %1977 = vmatprep.subr.bf16.mxu0 %v1403
    %1978 = vmatpush2.bf16.msra.mxu0 %v1402
    %1979 = vmatprep.subr.bf16.mxu0 %v1399
    %1980 = vmatpush2.bf16.msra.mxu0 %v1398
    %1981 = vmatprep.mubr.bf16.mxu0 %v95
    %1982 = vmatmul.mubr.bf16.gmra.mxu0 %v94
    %v1983 = vpop.f32.mrf.mxu0
    %v1984 = vadd.f32 %v1941, %v1983
    %v1985 = vpop.f32.mrf.mxu0
    %v1986 = vadd.f32 %v1943, %v1985
    %v1987 = vpop.f32.mrf.mxu0
    %v1988 = vadd.f32 %v1945, %v1987
    %v1989 = vpop.f32.mrf.mxu0
    %v1990 = vadd.f32 %v1947, %v1989
    %1991 = vdwg.mxu0
    %1992 = vmatprep.subr.bf16.mxu0 %v1459
    %1993 = vmatpush1.bf16.msra.mxu0 %v1458
    %1994 = vmatprep.subr.bf16.mxu0 %v1455
    %1995 = vmatpush1.bf16.msra.mxu0 %v1454
    %1996 = vmatprep.subr.bf16.mxu0 %v1451
    %1997 = vmatpush1.bf16.msra.mxu0 %v1450
    %1998 = vmatprep.subr.bf16.mxu0 %v1447
    %1999 = vmatpush1.bf16.msra.mxu0 %v1446
    %2000 = vmatprep.subr.bf16.mxu0 %v1443
    %2001 = vmatpush1.bf16.msra.mxu0 %v1442
    %2002 = vmatprep.subr.bf16.mxu0 %v1439
    %2003 = vmatpush1.bf16.msra.mxu0 %v1438
    %2004 = vmatprep.subr.bf16.mxu0 %v1435
    %2005 = vmatpush1.bf16.msra.mxu0 %v1434
    %2006 = vmatprep.subr.bf16.mxu0 %v1431
    %2007 = vmatpush1.bf16.msra.mxu0 %v1430
    %2008 = vmatprep.subr.bf16.mxu0 %v1491
    %2009 = vmatpush2.bf16.msra.mxu0 %v1490
    %2010 = vmatprep.subr.bf16.mxu0 %v1487
    %2011 = vmatpush2.bf16.msra.mxu0 %v1486
    %2012 = vmatprep.subr.bf16.mxu0 %v1483
    %2013 = vmatpush2.bf16.msra.mxu0 %v1482
    %2014 = vmatprep.subr.bf16.mxu0 %v1479
    %2015 = vmatpush2.bf16.msra.mxu0 %v1478
    %2016 = vmatprep.subr.bf16.mxu0 %v1475
    %2017 = vmatpush2.bf16.msra.mxu0 %v1474
    %2018 = vmatprep.subr.bf16.mxu0 %v1471
    %2019 = vmatpush2.bf16.msra.mxu0 %v1470
    %2020 = vmatprep.subr.bf16.mxu0 %v1467
    %2021 = vmatpush2.bf16.msra.mxu0 %v1466
    %2022 = vmatprep.subr.bf16.mxu0 %v1463
    %2023 = vmatpush2.bf16.msra.mxu0 %v1462
    %2024 = vmatprep.mubr.bf16.mxu0 %v97
    %2025 = vmatmul.mubr.bf16.gmra.mxu0 %v96
    %v2026 = vpop.f32.mrf.mxu0
    %v2027 = vadd.f32 %v1984, %v2026
    %v2028 = vpop.f32.mrf.mxu0
    %v2029 = vadd.f32 %v1986, %v2028
    %v2030 = vpop.f32.mrf.mxu0
    %v2031 = vadd.f32 %v1988, %v2030
    %v2032 = vpop.f32.mrf.mxu0
    %v2033 = vadd.f32 %v1990, %v2032
    %2034 = vdwg.mxu0
    %2035 = vmatprep.subr.bf16.mxu0 %v1523
    %2036 = vmatpush1.bf16.msra.mxu0 %v1522
    %2037 = vmatprep.subr.bf16.mxu0 %v1519
    %2038 = vmatpush1.bf16.msra.mxu0 %v1518
    %2039 = vmatprep.subr.bf16.mxu0 %v1515
    %2040 = vmatpush1.bf16.msra.mxu0 %v1514
    %2041 = vmatprep.subr.bf16.mxu0 %v1511
    %2042 = vmatpush1.bf16.msra.mxu0 %v1510
    %2043 = vmatprep.subr.bf16.mxu0 %v1507
    %2044 = vmatpush1.bf16.msra.mxu0 %v1506
    %2045 = vmatprep.subr.bf16.mxu0 %v1503
    %2046 = vmatpush1.bf16.msra.mxu0 %v1502
    %2047 = vmatprep.subr.bf16.mxu0 %v1499
    %2048 = vmatpush1.bf16.msra.mxu0 %v1498
    %2049 = vmatprep.subr.bf16.mxu0 %v1495
    %2050 = vmatpush1.bf16.msra.mxu0 %v1494
    %2051 = vmatprep.subr.bf16.mxu0 %v1555
    %2052 = vmatpush2.bf16.msra.mxu0 %v1554
    %2053 = vmatprep.subr.bf16.mxu0 %v1551
    %2054 = vmatpush2.bf16.msra.mxu0 %v1550
    %2055 = vmatprep.subr.bf16.mxu0 %v1547
    %2056 = vmatpush2.bf16.msra.mxu0 %v1546
    %2057 = vmatprep.subr.bf16.mxu0 %v1543
    %2058 = vmatpush2.bf16.msra.mxu0 %v1542
    %2059 = vmatprep.subr.bf16.mxu0 %v1539
    %2060 = vmatpush2.bf16.msra.mxu0 %v1538
    %2061 = vmatprep.subr.bf16.mxu0 %v1535
    %2062 = vmatpush2.bf16.msra.mxu0 %v1534
    %2063 = vmatprep.subr.bf16.mxu0 %v1531
    %2064 = vmatpush2.bf16.msra.mxu0 %v1530
    %2065 = vmatprep.subr.bf16.mxu0 %v1527
    %2066 = vmatpush2.bf16.msra.mxu0 %v1526
    %2067 = vmatprep.mubr.bf16.mxu0 %v99
    %2068 = vmatmul.mubr.bf16.gmra.mxu0 %v98
    %v2069 = vpop.f32.mrf.mxu0
    %v2070 = vadd.f32 %v2027, %v2069
    %v2071 = vpop.f32.mrf.mxu0
    %v2072 = vadd.f32 %v2029, %v2071
    %v2073 = vpop.f32.mrf.mxu0
    %v2074 = vadd.f32 %v2031, %v2073
    %v2075 = vpop.f32.mrf.mxu0
    %v2076 = vadd.f32 %v2033, %v2075
    %2077 = vdwg.mxu0
    %2078 = vmatprep.subr.bf16.mxu0 %v1587
    %2079 = vmatpush1.bf16.msra.mxu0 %v1586
    %2080 = vmatprep.subr.bf16.mxu0 %v1583
    %2081 = vmatpush1.bf16.msra.mxu0 %v1582
    %2082 = vmatprep.subr.bf16.mxu0 %v1579
    %2083 = vmatpush1.bf16.msra.mxu0 %v1578
    %2084 = vmatprep.subr.bf16.mxu0 %v1575
    %2085 = vmatpush1.bf16.msra.mxu0 %v1574
    %2086 = vmatprep.subr.bf16.mxu0 %v1571
    %2087 = vmatpush1.bf16.msra.mxu0 %v1570
    %2088 = vmatprep.subr.bf16.mxu0 %v1567
    %2089 = vmatpush1.bf16.msra.mxu0 %v1566
    %2090 = vmatprep.subr.bf16.mxu0 %v1563
    %2091 = vmatpush1.bf16.msra.mxu0 %v1562
    %2092 = vmatprep.subr.bf16.mxu0 %v1559
    %2093 = vmatpush1.bf16.msra.mxu0 %v1558
    %2094 = vmatprep.subr.bf16.mxu0 0
    %2095 = vmatpush2.bf16.msra.mxu0 0
    %2096 = vmatprep.subr.bf16.mxu0 0
    %2097 = vmatpush2.bf16.msra.mxu0 0
    %2098 = vmatprep.subr.bf16.mxu0 0
    %2099 = vmatpush2.bf16.msra.mxu0 0
    %2100 = vmatprep.subr.bf16.mxu0 0
    %2101 = vmatpush2.bf16.msra.mxu0 0
    %2102 = vmatprep.subr.bf16.mxu0 0
    %2103 = vmatpush2.bf16.msra.mxu0 0
    %2104 = vmatprep.subr.bf16.mxu0 %v1599
    %2105 = vmatpush2.bf16.msra.mxu0 %v1598
    %2106 = vmatprep.subr.bf16.mxu0 %v1595
    %2107 = vmatpush2.bf16.msra.mxu0 %v1594
    %2108 = vmatprep.subr.bf16.mxu0 %v1591
    %2109 = vmatpush2.bf16.msra.mxu0 %v1590
    %2110 = vmatprep.mubr.bf16.mxu0 %v1904
    %2111 = vmatmul.mubr.bf16.gmra.mxu0 %v100
    %v2112 = vpop.f32.mrf.mxu0
    %v2113 = vadd.f32 %v2070, %v2112
    %v2114 = vpop.f32.mrf.mxu0
    %v2115 = vadd.f32 %v2072, %v2114
    %v2116 = vpop.f32.mrf.mxu0
    %v2117 = vadd.f32 %v2074, %v2116
    %v2118 = vpop.f32.mrf.mxu0
    %v2119 = vadd.f32 %v2076, %v2118
    %2120 = vdwg.mxu0
    %2121 = vmatprep.subr.bf16.mxu0 %v1333
    %2122 = vmatpush1.bf16.msra.mxu0 %v1332
    %2123 = vmatprep.subr.bf16.mxu0 %v1329
    %2124 = vmatpush1.bf16.msra.mxu0 %v1328
    %2125 = vmatprep.subr.bf16.mxu0 %v1325
    %2126 = vmatpush1.bf16.msra.mxu0 %v1324
    %2127 = vmatprep.subr.bf16.mxu0 %v1321
    %2128 = vmatpush1.bf16.msra.mxu0 %v1320
    %2129 = vmatprep.subr.bf16.mxu0 %v1317
    %2130 = vmatpush1.bf16.msra.mxu0 %v1316
    %2131 = vmatprep.subr.bf16.mxu0 %v1313
    %2132 = vmatpush1.bf16.msra.mxu0 %v1312
    %2133 = vmatprep.subr.bf16.mxu0 %v1309
    %2134 = vmatpush1.bf16.msra.mxu0 %v1308
    %2135 = vmatprep.subr.bf16.mxu0 %v1305
    %2136 = vmatpush1.bf16.msra.mxu0 %v1304
    %2137 = vmatprep.subr.bf16.mxu0 %v1365
    %2138 = vmatpush2.bf16.msra.mxu0 %v1364
    %2139 = vmatprep.subr.bf16.mxu0 %v1361
    %2140 = vmatpush2.bf16.msra.mxu0 %v1360
    %2141 = vmatprep.subr.bf16.mxu0 %v1357
    %2142 = vmatpush2.bf16.msra.mxu0 %v1356
    %2143 = vmatprep.subr.bf16.mxu0 %v1353
    %2144 = vmatpush2.bf16.msra.mxu0 %v1352
    %2145 = vmatprep.subr.bf16.mxu0 %v1349
    %2146 = vmatpush2.bf16.msra.mxu0 %v1348
    %2147 = vmatprep.subr.bf16.mxu0 %v1345
    %2148 = vmatpush2.bf16.msra.mxu0 %v1344
    %2149 = vmatprep.subr.bf16.mxu0 %v1341
    %2150 = vmatpush2.bf16.msra.mxu0 %v1340
    %2151 = vmatprep.subr.bf16.mxu0 %v1337
    %2152 = vmatpush2.bf16.msra.mxu0 %v1336
    %2153 = vmatprep.mubr.bf16.mxu0 %v93
    %2154 = vmatmul.mubr.bf16.gmra.mxu0 %v92
    %v2155 = vpop.f32.mrf.mxu0
    %v2156 = vadd.f32 0.0, %v2155
    %v2157 = vpop.f32.mrf.mxu0
    %v2158 = vadd.f32 0.0, %v2157
    %v2159 = vpop.f32.mrf.mxu0
    %v2160 = vadd.f32 0.0, %v2159
    %v2161 = vpop.f32.mrf.mxu0
    %v2162 = vadd.f32 0.0, %v2161
    %2163 = vdwg.mxu0
    %2164 = vmatprep.subr.bf16.mxu0 %v1397
    %2165 = vmatpush1.bf16.msra.mxu0 %v1396
    %2166 = vmatprep.subr.bf16.mxu0 %v1393
    %2167 = vmatpush1.bf16.msra.mxu0 %v1392
    %2168 = vmatprep.subr.bf16.mxu0 %v1389
    %2169 = vmatpush1.bf16.msra.mxu0 %v1388
    %2170 = vmatprep.subr.bf16.mxu0 %v1385
    %2171 = vmatpush1.bf16.msra.mxu0 %v1384
    %2172 = vmatprep.subr.bf16.mxu0 %v1381
    %2173 = vmatpush1.bf16.msra.mxu0 %v1380
    %2174 = vmatprep.subr.bf16.mxu0 %v1377
    %2175 = vmatpush1.bf16.msra.mxu0 %v1376
    %2176 = vmatprep.subr.bf16.mxu0 %v1373
    %2177 = vmatpush1.bf16.msra.mxu0 %v1372
    %2178 = vmatprep.subr.bf16.mxu0 %v1369
    %2179 = vmatpush1.bf16.msra.mxu0 %v1368
    %2180 = vmatprep.subr.bf16.mxu0 %v1429
    %2181 = vmatpush2.bf16.msra.mxu0 %v1428
    %2182 = vmatprep.subr.bf16.mxu0 %v1425
    %2183 = vmatpush2.bf16.msra.mxu0 %v1424
    %2184 = vmatprep.subr.bf16.mxu0 %v1421
    %2185 = vmatpush2.bf16.msra.mxu0 %v1420
    %2186 = vmatprep.subr.bf16.mxu0 %v1417
    %2187 = vmatpush2.bf16.msra.mxu0 %v1416
    %2188 = vmatprep.subr.bf16.mxu0 %v1413
    %2189 = vmatpush2.bf16.msra.mxu0 %v1412
    %2190 = vmatprep.subr.bf16.mxu0 %v1409
    %2191 = vmatpush2.bf16.msra.mxu0 %v1408
    %2192 = vmatprep.subr.bf16.mxu0 %v1405
    %2193 = vmatpush2.bf16.msra.mxu0 %v1404
    %2194 = vmatprep.subr.bf16.mxu0 %v1401
    %2195 = vmatpush2.bf16.msra.mxu0 %v1400
    %2196 = vmatprep.mubr.bf16.mxu0 %v95
    %2197 = vmatmul.mubr.bf16.gmra.mxu0 %v94
    %v2198 = vpop.f32.mrf.mxu0
    %v2199 = vadd.f32 %v2156, %v2198
    %v2200 = vpop.f32.mrf.mxu0
    %v2201 = vadd.f32 %v2158, %v2200
    %v2202 = vpop.f32.mrf.mxu0
    %v2203 = vadd.f32 %v2160, %v2202
    %v2204 = vpop.f32.mrf.mxu0
    %v2205 = vadd.f32 %v2162, %v2204
    %2206 = vdwg.mxu0
    %2207 = vmatprep.subr.bf16.mxu0 %v1461
    %2208 = vmatpush1.bf16.msra.mxu0 %v1460
    %2209 = vmatprep.subr.bf16.mxu0 %v1457
    %2210 = vmatpush1.bf16.msra.mxu0 %v1456
    %2211 = vmatprep.subr.bf16.mxu0 %v1453
    %2212 = vmatpush1.bf16.msra.mxu0 %v1452
    %2213 = vmatprep.subr.bf16.mxu0 %v1449
    %2214 = vmatpush1.bf16.msra.mxu0 %v1448
    %2215 = vmatprep.subr.bf16.mxu0 %v1445
    %2216 = vmatpush1.bf16.msra.mxu0 %v1444
    %2217 = vmatprep.subr.bf16.mxu0 %v1441
    %2218 = vmatpush1.bf16.msra.mxu0 %v1440
    %2219 = vmatprep.subr.bf16.mxu0 %v1437
    %2220 = vmatpush1.bf16.msra.mxu0 %v1436
    %2221 = vmatprep.subr.bf16.mxu0 %v1433
    %2222 = vmatpush1.bf16.msra.mxu0 %v1432
    %2223 = vmatprep.subr.bf16.mxu0 %v1493
    %2224 = vmatpush2.bf16.msra.mxu0 %v1492
    %2225 = vmatprep.subr.bf16.mxu0 %v1489
    %2226 = vmatpush2.bf16.msra.mxu0 %v1488
    %2227 = vmatprep.subr.bf16.mxu0 %v1485
    %2228 = vmatpush2.bf16.msra.mxu0 %v1484
    %2229 = vmatprep.subr.bf16.mxu0 %v1481
    %2230 = vmatpush2.bf16.msra.mxu0 %v1480
    %2231 = vmatprep.subr.bf16.mxu0 %v1477
    %2232 = vmatpush2.bf16.msra.mxu0 %v1476
    %2233 = vmatprep.subr.bf16.mxu0 %v1473
    %2234 = vmatpush2.bf16.msra.mxu0 %v1472
    %2235 = vmatprep.subr.bf16.mxu0 %v1469
    %2236 = vmatpush2.bf16.msra.mxu0 %v1468
    %2237 = vmatprep.subr.bf16.mxu0 %v1465
    %2238 = vmatpush2.bf16.msra.mxu0 %v1464
    %2239 = vmatprep.mubr.bf16.mxu0 %v97
    %2240 = vmatmul.mubr.bf16.gmra.mxu0 %v96
    %v2241 = vpop.f32.mrf.mxu0
    %v2242 = vadd.f32 %v2199, %v2241
    %v2243 = vpop.f32.mrf.mxu0
    %v2244 = vadd.f32 %v2201, %v2243
    %v2245 = vpop.f32.mrf.mxu0
    %v2246 = vadd.f32 %v2203, %v2245
    %v2247 = vpop.f32.mrf.mxu0
    %v2248 = vadd.f32 %v2205, %v2247
    %2249 = vdwg.mxu0
    %2250 = vmatprep.subr.bf16.mxu0 %v1525
    %2251 = vmatpush1.bf16.msra.mxu0 %v1524
    %2252 = vmatprep.subr.bf16.mxu0 %v1521
    %2253 = vmatpush1.bf16.msra.mxu0 %v1520
    %2254 = vmatprep.subr.bf16.mxu0 %v1517
    %2255 = vmatpush1.bf16.msra.mxu0 %v1516
    %2256 = vmatprep.subr.bf16.mxu0 %v1513
    %2257 = vmatpush1.bf16.msra.mxu0 %v1512
    %2258 = vmatprep.subr.bf16.mxu0 %v1509
    %2259 = vmatpush1.bf16.msra.mxu0 %v1508
    %2260 = vmatprep.subr.bf16.mxu0 %v1505
    %2261 = vmatpush1.bf16.msra.mxu0 %v1504
    %2262 = vmatprep.subr.bf16.mxu0 %v1501
    %2263 = vmatpush1.bf16.msra.mxu0 %v1500
    %2264 = vmatprep.subr.bf16.mxu0 %v1497
    %2265 = vmatpush1.bf16.msra.mxu0 %v1496
    %2266 = vmatprep.subr.bf16.mxu0 %v1557
    %2267 = vmatpush2.bf16.msra.mxu0 %v1556
    %2268 = vmatprep.subr.bf16.mxu0 %v1553
    %2269 = vmatpush2.bf16.msra.mxu0 %v1552
    %2270 = vmatprep.subr.bf16.mxu0 %v1549
    %2271 = vmatpush2.bf16.msra.mxu0 %v1548
    %2272 = vmatprep.subr.bf16.mxu0 %v1545
    %2273 = vmatpush2.bf16.msra.mxu0 %v1544
    %2274 = vmatprep.subr.bf16.mxu0 %v1541
    %2275 = vmatpush2.bf16.msra.mxu0 %v1540
    %2276 = vmatprep.subr.bf16.mxu0 %v1537
    %2277 = vmatpush2.bf16.msra.mxu0 %v1536
    %2278 = vmatprep.subr.bf16.mxu0 %v1533
    %2279 = vmatpush2.bf16.msra.mxu0 %v1532
    %2280 = vmatprep.subr.bf16.mxu0 %v1529
    %2281 = vmatpush2.bf16.msra.mxu0 %v1528
    %2282 = vmatprep.mubr.bf16.mxu0 %v99
    %2283 = vmatmul.mubr.bf16.gmra.mxu0 %v98
    %v2284 = vpop.f32.mrf.mxu0
    %v2285 = vadd.f32 %v2242, %v2284
    %v2286 = vpop.f32.mrf.mxu0
    %v2287 = vadd.f32 %v2244, %v2286
    %v2288 = vpop.f32.mrf.mxu0
    %v2289 = vadd.f32 %v2246, %v2288
    %v2290 = vpop.f32.mrf.mxu0
    %v2291 = vadd.f32 %v2248, %v2290
    %2292 = vdwg.mxu0
    %2293 = vmatprep.subr.bf16.mxu0 %v1589
    %2294 = vmatpush1.bf16.msra.mxu0 %v1588
    %2295 = vmatprep.subr.bf16.mxu0 %v1585
    %2296 = vmatpush1.bf16.msra.mxu0 %v1584
    %2297 = vmatprep.subr.bf16.mxu0 %v1581
    %2298 = vmatpush1.bf16.msra.mxu0 %v1580
    %2299 = vmatprep.subr.bf16.mxu0 %v1577
    %2300 = vmatpush1.bf16.msra.mxu0 %v1576
    %2301 = vmatprep.subr.bf16.mxu0 %v1573
    %2302 = vmatpush1.bf16.msra.mxu0 %v1572
    %2303 = vmatprep.subr.bf16.mxu0 %v1569
    %2304 = vmatpush1.bf16.msra.mxu0 %v1568
    %2305 = vmatprep.subr.bf16.mxu0 %v1565
    %2306 = vmatpush1.bf16.msra.mxu0 %v1564
    %2307 = vmatprep.subr.bf16.mxu0 %v1561
    %2308 = vmatpush1.bf16.msra.mxu0 %v1560
    %2309 = vmatprep.subr.bf16.mxu0 0
    %2310 = vmatpush2.bf16.msra.mxu0 0
    %2311 = vmatprep.subr.bf16.mxu0 0
    %2312 = vmatpush2.bf16.msra.mxu0 0
    %2313 = vmatprep.subr.bf16.mxu0 0
    %2314 = vmatpush2.bf16.msra.mxu0 0
    %2315 = vmatprep.subr.bf16.mxu0 0
    %2316 = vmatpush2.bf16.msra.mxu0 0
    %2317 = vmatprep.subr.bf16.mxu0 0
    %2318 = vmatpush2.bf16.msra.mxu0 0
    %2319 = vmatprep.subr.bf16.mxu0 %v1601
    %2320 = vmatpush2.bf16.msra.mxu0 %v1600
    %2321 = vmatprep.subr.bf16.mxu0 %v1597
    %2322 = vmatpush2.bf16.msra.mxu0 %v1596
    %2323 = vmatprep.subr.bf16.mxu0 %v1593
    %2324 = vmatpush2.bf16.msra.mxu0 %v1592
    %2325 = vmatprep.mubr.bf16.mxu0 %v1904
    %2326 = vmatmul.mubr.bf16.gmra.mxu0 %v100
    %v2327 = vpop.f32.mrf.mxu0
    %v2328 = vadd.f32 %v2285, %v2327
    %v2329 = vpop.f32.mrf.mxu0
    %v2330 = vadd.f32 %v2287, %v2329
    %v2331 = vpop.f32.mrf.mxu0
    %v2332 = vadd.f32 %v2289, %v2331
    %v2333 = vpop.f32.mrf.mxu0
    %v2334 = vadd.f32 %v2291, %v2333
    %2335 = vdwg.mxu0
    %v2336 = vpack.c.bf16 %v2117, %v2113
    %v2337 = vpack.c.bf16 %v2119, %v2115
    %v2338 = vpack.c.bf16 %v2332, %v2328
    %v2339 = vpack.c.bf16 %v2334, %v2330
    %v2340 = vld [vmem:[#allocation7] sm:$0xf]
    %v2341 = vld [vmem:[#allocation7 + $0x4] sm:$0xf]
    %v2342 = vld [vmem:[#allocation7 + $0x8] sm:$0xf]
    %v2343 = vld [vmem:[#allocation7 + $0xc] sm:$0xf]
    %v2344 = vld [vmem:[#allocation7 + $0x10] sm:$0xf]
    %v2345 = vld [vmem:[#allocation7 + $0x14] sm:$0xf]
    %v2346 = vld [vmem:[#allocation7 + $0x18] sm:$0xf]
    %v2347 = vld [vmem:[#allocation7 + $0x1c] sm:$0xf]
    %v2348 = vld [vmem:[#allocation7 + $0x20] sm:$0xf]
    %v2349 = vld [vmem:[#allocation7 + $0x24] sm:$0xf]
    %v2350 = vld [vmem:[#allocation7 + $0x28] sm:$0xf]
    %v2351 = vld [vmem:[#allocation7 + $0x2c] sm:$0xf]
    %v2352 = vld [vmem:[#allocation7 + $0x30] sm:$0xf]
    %v2353 = vld [vmem:[#allocation7 + $0x34] sm:$0xf]
    %v2354 = vld [vmem:[#allocation7 + $0x38] sm:$0xf]
    %v2355 = vld [vmem:[#allocation7 + $0x3c] sm:$0xf]
    %v2356 = vld [vmem:[#allocation7 + $0x40] sm:$0xf]
    %v2357 = vld [vmem:[#allocation7 + $0x44] sm:$0xf]
    %v2358 = vld [vmem:[#allocation7 + $0x48] sm:$0xf]
    %v2359 = vld [vmem:[#allocation7 + $0x4c] sm:$0xf]
    %v2360 = vld [vmem:[#allocation7 + $0x50] sm:$0xf]
    %v2361 = vld [vmem:[#allocation7 + $0x54] sm:$0xf]
    %v2362 = vld [vmem:[#allocation7 + $0x58] sm:$0xf]
    %v2363 = vld [vmem:[#allocation7 + $0x5c] sm:$0xf]
    %v2364 = vld [vmem:[#allocation7 + $0x60] sm:$0xf]
    %v2365 = vld [vmem:[#allocation7 + $0x64] sm:$0xf]
    %v2366 = vld [vmem:[#allocation7 + $0x68] sm:$0xf]
    %v2367 = vld [vmem:[#allocation7 + $0x6c] sm:$0xf]
    %v2368 = vld [vmem:[#allocation7 + $0x70] sm:$0xf]
    %v2369 = vld [vmem:[#allocation7 + $0x74] sm:$0xf]
    %v2370 = vld [vmem:[#allocation7 + $0x78] sm:$0xf]
    %v2371 = vld [vmem:[#allocation7 + $0x7c] sm:$0xf]
    %v2372 = vld [vmem:[#allocation7 + $0x80] sm:$0xf]
    %v2373 = vld [vmem:[#allocation7 + $0x84] sm:$0xf]
    %v2374 = vld [vmem:[#allocation7 + $0x88] sm:$0xf]
    %v2375 = vld [vmem:[#allocation7 + $0x8c] sm:$0xf]
    %v2376 = vld [vmem:[#allocation7 + $0x90] sm:$0xf]
    %v2377 = vld [vmem:[#allocation7 + $0x94] sm:$0xf]
    %v2378 = vld [vmem:[#allocation7 + $0x98] sm:$0xf]
    %v2379 = vld [vmem:[#allocation7 + $0x9c] sm:$0xf]
    %v2380 = vld [vmem:[#allocation7 + $0xa0] sm:$0xf]
    %v2381 = vld [vmem:[#allocation7 + $0xa4] sm:$0xf]
    %v2382 = vld [vmem:[#allocation7 + $0xa8] sm:$0xf]
    %v2383 = vld [vmem:[#allocation7 + $0xac] sm:$0xf]
    %v2384 = vld [vmem:[#allocation7 + $0xb0] sm:$0xf]
    %v2385 = vld [vmem:[#allocation7 + $0xb4] sm:$0xf]
    %v2386 = vld [vmem:[#allocation7 + $0xb8] sm:$0xf]
    %v2387 = vld [vmem:[#allocation7 + $0xbc] sm:$0xf]
    %v2388 = vld [vmem:[#allocation7 + $0xc0] sm:$0xf]
    %v2389 = vld [vmem:[#allocation7 + $0xc4] sm:$0xf]
    %v2390 = vld [vmem:[#allocation7 + $0xc8] sm:$0xf]
    %v2391 = vld [vmem:[#allocation7 + $0xcc] sm:$0xf]
    %v2392 = vld [vmem:[#allocation7 + $0xd0] sm:$0xf]
    %v2393 = vld [vmem:[#allocation7 + $0xd4] sm:$0xf]
    %v2394 = vld [vmem:[#allocation7 + $0xd8] sm:$0xf]
    %v2395 = vld [vmem:[#allocation7 + $0xdc] sm:$0xf]
    %v2396 = vld [vmem:[#allocation7 + $0xe0] sm:$0xf]
    %v2397 = vld [vmem:[#allocation7 + $0xe4] sm:$0xf]
    %v2398 = vld [vmem:[#allocation7 + $0xe8] sm:$0xf]
    %v2399 = vld [vmem:[#allocation7 + $0xec] sm:$0xf]
    %v2400 = vld [vmem:[#allocation7 + $0xf0] sm:$0xf]
    %v2401 = vld [vmem:[#allocation7 + $0xf4] sm:$0xf]
    %v2402 = vld [vmem:[#allocation7 + $0xf8] sm:$0xf]
    %v2403 = vld [vmem:[#allocation7 + $0xfc] sm:$0xf]
    %v2404 = vld [vmem:[#allocation8] sm:$0x1]
    %v2406 = vlaneseq
    %v2407 = vshrl.u32 %v2406, 7
    %v2408 = vsub.s32 0, %v2407
    %v2409 = vrot.slane %v2404, %v2408
    %v2475 = vunpack.c.l.b16 %v2340
    %v2476 = vunpack.c.l.b16 %v2341
    %v2477 = vunpack.c.l.b16 %v2342
    %v2478 = vunpack.c.l.b16 %v2343
    %v2479 = vunpack.c.l.b16 %v2344
    %v2480 = vunpack.c.l.b16 %v2345
    %v2481 = vunpack.c.l.b16 %v2346
    %v2482 = vunpack.c.l.b16 %v2347
    %v2483 = vunpack.c.l.b16 %v2348
    %v2484 = vunpack.c.l.b16 %v2349
    %v2485 = vunpack.c.l.b16 %v2350
    %v2486 = vunpack.c.l.b16 %v2351
    %v2487 = vunpack.c.l.b16 %v2352
    %v2488 = vunpack.c.l.b16 %v2353
    %v2489 = vunpack.c.l.b16 %v2354
    %v2490 = vunpack.c.l.b16 %v2355
    %v2491 = vunpack.c.l.b16 %v2356
    %v2492 = vunpack.c.l.b16 %v2357
    %v2493 = vunpack.c.l.b16 %v2358
    %v2494 = vunpack.c.l.b16 %v2359
    %v2495 = vunpack.c.l.b16 %v2360
    %v2496 = vunpack.c.l.b16 %v2361
    %v2497 = vunpack.c.l.b16 %v2362
    %v2498 = vunpack.c.l.b16 %v2363
    %v2499 = vunpack.c.l.b16 %v2364
    %v2500 = vunpack.c.l.b16 %v2365
    %v2501 = vunpack.c.l.b16 %v2366
    %v2502 = vunpack.c.l.b16 %v2367
    %v2503 = vunpack.c.l.b16 %v2368
    %v2504 = vunpack.c.l.b16 %v2369
    %v2505 = vunpack.c.l.b16 %v2370
    %v2506 = vunpack.c.l.b16 %v2371
    %v2507 = vunpack.c.l.b16 %v2372
    %v2508 = vunpack.c.l.b16 %v2373
    %v2509 = vunpack.c.l.b16 %v2374
    %v2510 = vunpack.c.l.b16 %v2375
    %v2511 = vunpack.c.l.b16 %v2376
    %v2512 = vunpack.c.l.b16 %v2377
    %v2513 = vunpack.c.l.b16 %v2378
    %v2514 = vunpack.c.l.b16 %v2379
    %v2515 = vunpack.c.l.b16 %v2380
    %v2516 = vunpack.c.l.b16 %v2381
    %v2517 = vunpack.c.l.b16 %v2382
    %v2518 = vunpack.c.l.b16 %v2383
    %v2519 = vunpack.c.l.b16 %v2384
    %v2520 = vunpack.c.l.b16 %v2385
    %v2521 = vunpack.c.l.b16 %v2386
    %v2522 = vunpack.c.l.b16 %v2387
    %v2523 = vunpack.c.l.b16 %v2388
    %v2524 = vunpack.c.l.b16 %v2389
    %v2525 = vunpack.c.l.b16 %v2390
    %v2526 = vunpack.c.l.b16 %v2391
    %v2527 = vunpack.c.l.b16 %v2392
    %v2528 = vunpack.c.l.b16 %v2393
    %v2529 = vunpack.c.l.b16 %v2394
    %v2530 = vunpack.c.l.b16 %v2395
    %v2531 = vunpack.c.l.b16 %v2396
    %v2532 = vunpack.c.l.b16 %v2397
    %v2533 = vunpack.c.l.b16 %v2398
    %v2534 = vunpack.c.l.b16 %v2399
    %v2535 = vunpack.c.l.b16 %v2400
    %v2536 = vunpack.c.l.b16 %v2401
    %v2537 = vunpack.c.l.b16 %v2402
    %v2538 = vunpack.c.l.b16 %v2403
    %v2539 = vpack.c.b16 %v2476, %v2475
    %v2540 = vpack.c.b16 %v2478, %v2477
    %v2541 = vpack.c.b16 %v2480, %v2479
    %v2542 = vpack.c.b16 %v2482, %v2481
    %v2543 = vpack.c.b16 %v2484, %v2483
    %v2544 = vpack.c.b16 %v2486, %v2485
    %v2545 = vpack.c.b16 %v2488, %v2487
    %v2546 = vpack.c.b16 %v2490, %v2489
    %v2547 = vpack.c.b16 %v2492, %v2491
    %v2548 = vpack.c.b16 %v2494, %v2493
    %v2549 = vpack.c.b16 %v2496, %v2495
    %v2550 = vpack.c.b16 %v2498, %v2497
    %v2551 = vpack.c.b16 %v2500, %v2499
    %v2552 = vpack.c.b16 %v2502, %v2501
    %v2553 = vpack.c.b16 %v2504, %v2503
    %v2554 = vpack.c.b16 %v2506, %v2505
    %v2555 = vpack.c.b16 %v2508, %v2507
    %v2556 = vpack.c.b16 %v2510, %v2509
    %v2557 = vpack.c.b16 %v2512, %v2511
    %v2558 = vpack.c.b16 %v2514, %v2513
    %v2559 = vpack.c.b16 %v2516, %v2515
    %v2560 = vpack.c.b16 %v2518, %v2517
    %v2561 = vpack.c.b16 %v2520, %v2519
    %v2562 = vpack.c.b16 %v2522, %v2521
    %v2563 = vpack.c.b16 %v2524, %v2523
    %v2564 = vpack.c.b16 %v2526, %v2525
    %v2565 = vpack.c.b16 %v2528, %v2527
    %v2566 = vpack.c.b16 %v2530, %v2529
    %v2567 = vpack.c.b16 %v2532, %v2531
    %v2568 = vpack.c.b16 %v2534, %v2533
    %v2569 = vpack.c.b16 %v2536, %v2535
    %v2570 = vpack.c.b16 %v2538, %v2537
    %2603 = vmatprep.subr.bf16.mxu0 0
    %2604 = vmatpush1.bf16.msra.mxu0 %v2546
    %2605 = vmatprep.subr.bf16.mxu0 0
    %2606 = vmatpush1.bf16.msra.mxu0 %v2545
    %2607 = vmatprep.subr.bf16.mxu0 0
    %2608 = vmatpush1.bf16.msra.mxu0 %v2544
    %2609 = vmatprep.subr.bf16.mxu0 0
    %2610 = vmatpush1.bf16.msra.mxu0 %v2543
    %2611 = vmatprep.subr.bf16.mxu0 0
    %2612 = vmatpush1.bf16.msra.mxu0 %v2542
    %2613 = vmatprep.subr.bf16.mxu0 0
    %2614 = vmatpush1.bf16.msra.mxu0 %v2541
    %2615 = vmatprep.subr.bf16.mxu0 0
    %2616 = vmatpush1.bf16.msra.mxu0 %v2540
    %2617 = vmatprep.subr.bf16.mxu0 0
    %2618 = vmatpush1.bf16.msra.mxu0 %v2539
    %2619 = vmatprep.subr.bf16.mxu0 0
    %2620 = vmatpush2.bf16.msra.mxu0 %v2554
    %2621 = vmatprep.subr.bf16.mxu0 0
    %2622 = vmatpush2.bf16.msra.mxu0 %v2553
    %2623 = vmatprep.subr.bf16.mxu0 0
    %2624 = vmatpush2.bf16.msra.mxu0 %v2552
    %2625 = vmatprep.subr.bf16.mxu0 0
    %2626 = vmatpush2.bf16.msra.mxu0 %v2551
    %2627 = vmatprep.subr.bf16.mxu0 0
    %2628 = vmatpush2.bf16.msra.mxu0 %v2550
    %2629 = vmatprep.subr.bf16.mxu0 0
    %2630 = vmatpush2.bf16.msra.mxu0 %v2549
    %2631 = vmatprep.subr.bf16.mxu0 0
    %2632 = vmatpush2.bf16.msra.mxu0 %v2548
    %2633 = vmatprep.subr.bf16.mxu0 0
    %2634 = vmatpush2.bf16.msra.mxu0 %v2547
    %2635 = vmatprep.mubr.bf16.mxu0 %v2337
    %2636 = vmatmul.mubr.bf16.gmra.mxu0 %v2336
    %v2637 = vpop.f32.mrf.mxu0
    %v2638 = vadd.f32 %v2409, %v2637
    %v2639 = vpop.f32.mrf.mxu0
    %v2640 = vpop.f32.mrf.mxu0
    %v2641 = vadd.f32 %v2409, %v2640
    %v2642 = vpop.f32.mrf.mxu0
    %2643 = vdwg.mxu0
    %2644 = vmatprep.subr.bf16.mxu0 0
    %2645 = vmatpush1.bf16.msra.mxu0 %v2562
    %2646 = vmatprep.subr.bf16.mxu0 0
    %2647 = vmatpush1.bf16.msra.mxu0 %v2561
    %2648 = vmatprep.subr.bf16.mxu0 0
    %2649 = vmatpush1.bf16.msra.mxu0 %v2560
    %2650 = vmatprep.subr.bf16.mxu0 0
    %2651 = vmatpush1.bf16.msra.mxu0 %v2559
    %2652 = vmatprep.subr.bf16.mxu0 0
    %2653 = vmatpush1.bf16.msra.mxu0 %v2558
    %2654 = vmatprep.subr.bf16.mxu0 0
    %2655 = vmatpush1.bf16.msra.mxu0 %v2557
    %2656 = vmatprep.subr.bf16.mxu0 0
    %2657 = vmatpush1.bf16.msra.mxu0 %v2556
    %2658 = vmatprep.subr.bf16.mxu0 0
    %2659 = vmatpush1.bf16.msra.mxu0 %v2555
    %2660 = vmatprep.subr.bf16.mxu0 0
    %2661 = vmatpush2.bf16.msra.mxu0 %v2570
    %2662 = vmatprep.subr.bf16.mxu0 0
    %2663 = vmatpush2.bf16.msra.mxu0 %v2569
    %2664 = vmatprep.subr.bf16.mxu0 0
    %2665 = vmatpush2.bf16.msra.mxu0 %v2568
    %2666 = vmatprep.subr.bf16.mxu0 0
    %2667 = vmatpush2.bf16.msra.mxu0 %v2567
    %2668 = vmatprep.subr.bf16.mxu0 0
    %2669 = vmatpush2.bf16.msra.mxu0 %v2566
    %2670 = vmatprep.subr.bf16.mxu0 0
    %2671 = vmatpush2.bf16.msra.mxu0 %v2565
    %2672 = vmatprep.subr.bf16.mxu0 0
    %2673 = vmatpush2.bf16.msra.mxu0 %v2564
    %2674 = vmatprep.subr.bf16.mxu0 0
    %2675 = vmatpush2.bf16.msra.mxu0 %v2563
    %2676 = vmatprep.mubr.bf16.mxu0 %v2339
    %2677 = vmatmul.mubr.bf16.gmra.mxu0 %v2338
    %v2678 = vpop.f32.mrf.mxu0
    %v2679 = vadd.f32 %v2638, %v2678
    %v2680 = vpop.f32.mrf.mxu0
    %v2681 = vpop.f32.mrf.mxu0
    %v2682 = vadd.f32 %v2641, %v2681
    %v2683 = vpop.f32.mrf.mxu0
    %2684 = vdwg.mxu0
    %2685 = vst [vmem:[#allocation10] sm:$0xff] %v2679
    %2686 = vst [vmem:[#allocation10 + $0x8] sm:$0xff] %v2682
    // Predicated region
    $region34: #{tpu_custom_call.1} parent=1 // pred_check
      _
    $region35: #{tpu_custom_call.1} parent=1 // pred_check_branch
      %2688 = sbr.rel (0) target = $region37
    $region36: #{tpu_custom_call.1} parent=1 // pred_region
      %s2690 = ssub.s32 256, 256
      %2691 = vsyncadd [#allocation4], %s2690
      %s2692 = sshll.u32 [#allocation10], 4
      %s2693 = int_to_ptr.vmem [resolvable:$true] %s2692
      %2698 = dma.vmem_to_hbm [thread:$0]  %s2693, 256, %s4, [#allocation4], 128, 128, 8
    $region37: #{tpu_custom_call.1} parent=1 // pred_fallthru
      _
    // Predicated region
    $region38: #{tpu_custom_call.1} parent=1 // pred_check
      _
    $region39: #{tpu_custom_call.1} parent=1 // pred_check_branch
      %2700 = sbr.rel (0) target = $region41
    $region40: #{tpu_custom_call.1} parent=1 // pred_region
      %2701 = dma.done [#allocation4], 256
    $region41: #{tpu_custom_call.1} parent=1 // pred_fallthru
      _
    %2702 = vsyncpa [#allocation3], 1
    %2703 = vsyncpa [#allocation6], 1
    %2704 = vsyncpa [#allocation9], 1
    %2705 = vsyncpa [#allocation4], 1

</llo_original>
